<compile_context>
chip_gen: v5e
topology: v5e:2x2
jax: 0.10.0
libtpu: 0.0.40
codegen_flags: <defaults>
</compile_context>

<pallas_src>
import math

import jax
import jax.numpy as jnp
from jax.experimental import pallas as pl
from jax.experimental.pallas import tpu as pltpu

D_MODEL = 32          # hidden_dim (scaled down from 128)
N_HEAD = 2            # num_attention_head
HEAD_DIM = D_MODEL // N_HEAD
FFN_DIM = 64          # ffn_dim (scaled down from 256)
NUM_LAYERS = 2        # num_layer
LN_EPS = 1e-5
NEG_INF = -1e30

# row indices inside the packed (L, 9, 128) small-parameter slab
(_ROW_BQKV, _ROW_BO, _ROW_WG, _ROW_B1, _ROW_B2,
 _ROW_G1, _ROW_BETA1, _ROW_G2, _ROW_BETA2) = range(9)
_SMALL_ROWS = 9
_SMALL_LANES = 128


def _layer_norm(x, gamma, beta):
    mean = jnp.mean(x, axis=-1, keepdims=True)
    var = jnp.mean((x - mean) ** 2, axis=-1, keepdims=True)
    return (x - mean) * jax.lax.rsqrt(var + LN_EPS) * gamma + beta


def cm2_encoder_kernel(x_ref, bias_ref, wqkv_ref, wo_ref, w1_ref, w2_ref,
                       small_ref, o_ref):
    """Full CM2Encoder forward (NUM_LAYERS fused post-norm layers), whole batch in one block.

    x_ref:     (T, D)        flattened (B*S) tokens
    bias_ref:  (T, T)        additive attention bias (0 valid / -1e30 cross-batch or padded)
    wqkv_ref:  (L, D, 3D)    fused QKV projection weights
    wo_ref:    (L, D, D)     attention out-projection weights
    w1_ref:    (L, D, F)     FFN linear1 weights
    w2_ref:    (L, F, D)     FFN linear2 weights
    small_ref: (L, 9, 128)   packed biases / gate row / LN params
    """
    x = x_ref[...].astype(jnp.float32)          # (T, D)
    bias = bias_ref[...]                        # (T, T)
    scale = 1.0 / math.sqrt(HEAD_DIM)

    for l in range(NUM_LAYERS):                 # static unroll; weights VMEM-resident
        small = small_ref[l]                    # (9, 128)
        bqkv  = small[_ROW_BQKV:_ROW_BQKV + 1, :3 * D_MODEL]
        bo    = small[_ROW_BO:_ROW_BO + 1, :D_MODEL]
        wg    = small[_ROW_WG:_ROW_WG + 1, :D_MODEL]
        b1    = small[_ROW_B1:_ROW_B1 + 1, :FFN_DIM]
        b2    = small[_ROW_B2:_ROW_B2 + 1, :D_MODEL]
        g1    = small[_ROW_G1:_ROW_G1 + 1, :D_MODEL]
        beta1 = small[_ROW_BETA1:_ROW_BETA1 + 1, :D_MODEL]
        g2    = small[_ROW_G2:_ROW_G2 + 1, :D_MODEL]
        beta2 = small[_ROW_BETA2:_ROW_BETA2 + 1, :D_MODEL]

        # ---- multi-head self-attention (fused QKV, flattened-batch attention) ----
        qkv = jnp.dot(x, wqkv_ref[l], preferred_element_type=jnp.float32) + bqkv
        q = qkv[:, :D_MODEL]
        k = qkv[:, D_MODEL:2 * D_MODEL]
        v = qkv[:, 2 * D_MODEL:]

        ctx_heads = []
        for h in range(N_HEAD):                 # static 2-iter unroll over heads
            lo, hi = h * HEAD_DIM, (h + 1) * HEAD_DIM
            s = jnp.dot(q[:, lo:hi], k[:, lo:hi].T,
                        preferred_element_type=jnp.float32) * scale + bias
            s = s - jnp.max(s, axis=-1, keepdims=True)
            p = jnp.exp(s)
            p = p / jnp.sum(p, axis=-1, keepdims=True)
            ctx_heads.append(jnp.dot(p, v[:, lo:hi],
                                     preferred_element_type=jnp.float32))
        ctx = jnp.concatenate(ctx_heads, axis=-1)                          # (T, D)
        attn_out = jnp.dot(ctx, wo_ref[l], preferred_element_type=jnp.float32) + bo

        # dropout1 is identity (p = 0); post-norm residual
        y = _layer_norm(x + attn_out, g1, beta1)

        # ---- gated feed-forward block ----
        # gate via VPU lane reduction instead of a (D,1) matmul
        gate = jax.nn.sigmoid(jnp.sum(y * wg, axis=-1, keepdims=True))     # (T, 1)
        h1 = jnp.dot(y, w1_ref[l], preferred_element_type=jnp.float32) + b1
        h1 = jnp.maximum(h1 * gate, 0.0)                                    # relu(linear1(y)*g)
        h2 = jnp.dot(h1, w2_ref[l], preferred_element_type=jnp.float32) + b2

        # dropout / dropout2 are identity (p = 0); residual + LayerNorm2
        x = _layer_norm(y + h2, g2, beta2)

    o_ref[...] = x.astype(o_ref.dtype)


def pack_layer_params(params_list):
    """Stack per-layer params into matmul-ready, Pallas-friendly slabs."""
    wqkv = jnp.stack([jnp.concatenate([p["wq"], p["wk"], p["wv"]], axis=1)
                      for p in params_list])                 # (L, D, 3D)
    wo = jnp.stack([p["wo"] for p in params_list])           # (L, D, D)
    w1 = jnp.stack([p["w1"] for p in params_list])           # (L, D, F)
    w2 = jnp.stack([p["w2"] for p in params_list])           # (L, F, D)

    def row(vec):
        vec = vec.reshape(1, -1).astype(jnp.float32)
        return jnp.pad(vec, ((0, 0), (0, _SMALL_LANES - vec.shape[1])))

    small = jnp.stack([
        jnp.concatenate([
            row(jnp.concatenate([p["bq"], p["bk"], p["bv"]], axis=1)),  # _ROW_BQKV
            row(p["bo"]),                                               # _ROW_BO
            row(p["wg"]),                                               # _ROW_WG  (D,1)->(1,D)
            row(p["b1"]),                                               # _ROW_B1
            row(p["b2"]),                                               # _ROW_B2
            row(p["g1"]),                                               # _ROW_G1
            row(p["beta1"]),                                            # _ROW_BETA1
            row(p["g2"]),                                               # _ROW_G2
            row(p["beta2"]),                                            # _ROW_BETA2
        ], axis=0)
        for p in params_list
    ])                                                       # (L, 9, 128)
    return wqkv, wo, w1, w2, small


def cm2_encoder_pallas(x, attention_mask, packed):
    """x: (B, S, D) float32; attention_mask: (B, S) with 1 = valid token, 0 = padded."""
    B, S, D = x.shape
    T = B * S
    wqkv, wo, w1, w2, small = packed

    # Precompute the additive attention bias over the flattened token axis:
    # a query only attends to non-padded keys in its own batch row.
    tok = jnp.arange(T)
    same_batch = (tok[:, None] // S) == (tok[None, :] // S)
    key_valid = (attention_mask.reshape(T) > 0.5)[None, :]
    attn_bias = jnp.where(same_batch & key_valid, 0.0, NEG_INF).astype(jnp.float32)

    x2 = x.reshape(T, D)
    args = (x2, attn_bias, wqkv, wo, w1, w2, small)

    def full_spec(a):
        nd = a.ndim
        return pl.BlockSpec(a.shape, lambda i, _nd=nd: (0,) * _nd)

    out = pl.pallas_call(
        cm2_encoder_kernel,
        out_shape=jax.ShapeDtypeStruct((T, D), jnp.float32),
        grid=(1,),
        in_specs=[full_spec(a) for a in args],
        out_specs=pl.BlockSpec((T, D), lambda i: (0, 0)),
        compiler_params=pltpu.CompilerParams(dimension_semantics=("arbitrary",)),
    )(*args)
    return out.reshape(B, S, D)


def init_layer_params(key, d, f):
    ks = jax.random.split(key, 14)
    s = 0.1
    return {
        "wq": jax.random.normal(ks[0], (d, d), jnp.float32) * s,
        "wk": jax.random.normal(ks[1], (d, d), jnp.float32) * s,
        "wv": jax.random.normal(ks[2], (d, d), jnp.float32) * s,
        "bq": jax.random.normal(ks[3], (1, d), jnp.float32) * s,
        "bk": jax.random.normal(ks[4], (1, d), jnp.float32) * s,
        "bv": jax.random.normal(ks[5], (1, d), jnp.float32) * s,
        "wo": jax.random.normal(ks[6], (d, d), jnp.float32) * s,
        "bo": jax.random.normal(ks[7], (1, d), jnp.float32) * s,
        "wg": jax.random.normal(ks[8], (d, 1), jnp.float32) * s,   # gate_linear (no bias)
        "w1": jax.random.normal(ks[9], (d, f), jnp.float32) * s,
        "b1": jax.random.normal(ks[10], (1, f), jnp.float32) * s,
        "w2": jax.random.normal(ks[11], (f, d), jnp.float32) * s,
        "b2": jax.random.normal(ks[12], (1, d), jnp.float32) * s,
        "g1": jnp.ones((1, d), jnp.float32),
        "beta1": jnp.zeros((1, d), jnp.float32),
        "g2": jnp.ones((1, d), jnp.float32),
        "beta2": jnp.zeros((1, d), jnp.float32),
    }


def cm2_layer_ref(x, mask, p):
    """Pure-JAX reference for one CM2TransformerLayer (dropout=0, post-norm)."""
    B, S, D = x.shape
    H, hd = N_HEAD, HEAD_DIM
    q = x @ p["wq"] + p["bq"]
    k = x @ p["wk"] + p["bk"]
    v = x @ p["wv"] + p["bv"]
    qh = q.reshape(B, S, H, hd).transpose(0, 2, 1, 3)
    kh = k.reshape(B, S, H, hd).transpose(0, 2, 1, 3)
    vh = v.reshape(B, S, H, hd).transpose(0, 2, 1, 3)
    s = jnp.einsum("bhqd,bhkd->bhqk", qh, kh) / (hd ** 0.5)
    bias = jnp.where(mask > 0.5, 0.0, NEG_INF)[:, None, None, :]
    pattn = jax.nn.softmax(s + bias, axis=-1)
    ctx = jnp.einsum("bhqk,bhkd->bhqd", pattn, vh).transpose(0, 2, 1, 3).reshape(B, S, D)
    attn_out = ctx @ p["wo"] + p["bo"]

    def ln(z, g, b):
        m = z.mean(-1, keepdims=True)
        var = ((z - m) ** 2).mean(-1, keepdims=True)
        return (z - m) / jnp.sqrt(var + LN_EPS) * g + b

    y = ln(x + attn_out, p["g1"], p["beta1"])
    gate = jax.nn.sigmoid(y @ p["wg"])
    h = jnp.maximum((y @ p["w1"] + p["b1"]) * gate, 0.0)
    h = h @ p["w2"] + p["b2"]
    return ln(y + h, p["g2"], p["beta2"])


if __name__ == "__main__":
    key = jax.random.PRNGKey(0)
    kx, kp = jax.random.split(key)
    B, S = 2, 8
    x = jax.random.normal(kx, (B, S, D_MODEL), jnp.float32)
    # attention_mask: 1 = valid token, 0 = padded (second row has 2 padded positions).
    mask = jnp.array([[1.0] * S, [1.0] * 6 + [0.0] * 2], dtype=jnp.float32)

    layer_keys = jax.random.split(kp, NUM_LAYERS)
    all_params = [init_layer_params(k, D_MODEL, FFN_DIM) for k in layer_keys]
    packed = pack_layer_params(all_params)

    out = jax.block_until_ready(cm2_encoder_pallas(x, mask, packed))

    ref = x
    for p in all_params:  # CM2Encoder: first layer + stacked (num_layer-1) copies
        ref = cm2_layer_ref(ref, mask, p)

    err = float(jnp.max(jnp.abs(out - ref)))
    assert out.shape == (B, S, D_MODEL)
    assert err < 2e-3, f"max abs err vs reference: {err}"
    print("KERNEL_OK")
</pallas_src>

<mosaic_0001>
module attributes {stable_mosaic.version = 11 : i64} {
  func.func @cm2_encoder_kernel(%arg0: i32, %arg1: memref<16x32xf32, #tpu.memory_space<vmem>>, %arg2: memref<16x16xf32, #tpu.memory_space<vmem>>, %arg3: memref<2x32x96xf32, #tpu.memory_space<vmem>>, %arg4: memref<2x32x32xf32, #tpu.memory_space<vmem>>, %arg5: memref<2x32x64xf32, #tpu.memory_space<vmem>>, %arg6: memref<2x64x32xf32, #tpu.memory_space<vmem>>, %arg7: memref<2x9x128xf32, #tpu.memory_space<vmem>>, %arg8: memref<16x32xf32, #tpu.memory_space<vmem>>) attributes {dimension_semantics = [#tpu.dimension_semantics<arbitrary>], iteration_bounds = array<i64: 1>, scalar_prefetch = 0 : i64, scratch_operands = 0 : i64, tpu.core_type = #tpu.core_type<tc>, window_params = [{pipeline_mode = #tpu.pipeline_mode<synchronous>, transform_indices = @transform_0, window_bounds = array<i64: 16, 32>}, {pipeline_mode = #tpu.pipeline_mode<synchronous>, transform_indices = @transform_1, window_bounds = array<i64: 16, 16>}, {pipeline_mode = #tpu.pipeline_mode<synchronous>, transform_indices = @transform_2, window_bounds = array<i64: 2, 32, 96>}, {pipeline_mode = #tpu.pipeline_mode<synchronous>, transform_indices = @transform_3, window_bounds = array<i64: 2, 32, 32>}, {pipeline_mode = #tpu.pipeline_mode<synchronous>, transform_indices = @transform_4, window_bounds = array<i64: 2, 32, 64>}, {pipeline_mode = #tpu.pipeline_mode<synchronous>, transform_indices = @transform_5, window_bounds = array<i64: 2, 64, 32>}, {pipeline_mode = #tpu.pipeline_mode<synchronous>, transform_indices = @transform_6, window_bounds = array<i64: 2, 9, 128>}, {pipeline_mode = #tpu.pipeline_mode<synchronous>, transform_indices = @transform_7, window_bounds = array<i64: 16, 32>}]} {
    %c0 = arith.constant 0 : index
    %c0_0 = arith.constant 0 : index
    %0 = vector.load %arg1[%c0, %c0_0] : memref<16x32xf32, #tpu.memory_space<vmem>>, vector<16x32xf32>
    %c0_1 = arith.constant 0 : index
    %c0_2 = arith.constant 0 : index
    %1 = vector.load %arg2[%c0_1, %c0_2] : memref<16x16xf32, #tpu.memory_space<vmem>>, vector<16x16xf32>
    %c0_3 = arith.constant 0 : index
    %c0_4 = arith.constant 0 : index
    %c0_5 = arith.constant 0 : index
    %2 = vector.load %arg7[%c0_3, %c0_4, %c0_5] : memref<2x9x128xf32, #tpu.memory_space<vmem>>, vector<1x9x128xf32>
    %3 = vector.shape_cast %2 : vector<1x9x128xf32> to vector<9x128xf32>
    %4 = vector.extract_strided_slice %3 {offsets = [0, 0], sizes = [1, 96], strides = [1, 1]} : vector<9x128xf32> to vector<1x96xf32>
    %5 = vector.extract_strided_slice %3 {offsets = [1, 0], sizes = [1, 32], strides = [1, 1]} : vector<9x128xf32> to vector<1x32xf32>
    %6 = vector.extract_strided_slice %3 {offsets = [2, 0], sizes = [1, 32], strides = [1, 1]} : vector<9x128xf32> to vector<1x32xf32>
    %7 = vector.extract_strided_slice %3 {offsets = [3, 0], sizes = [1, 64], strides = [1, 1]} : vector<9x128xf32> to vector<1x64xf32>
    %8 = vector.extract_strided_slice %3 {offsets = [4, 0], sizes = [1, 32], strides = [1, 1]} : vector<9x128xf32> to vector<1x32xf32>
    %9 = vector.extract_strided_slice %3 {offsets = [5, 0], sizes = [1, 32], strides = [1, 1]} : vector<9x128xf32> to vector<1x32xf32>
    %10 = vector.extract_strided_slice %3 {offsets = [6, 0], sizes = [1, 32], strides = [1, 1]} : vector<9x128xf32> to vector<1x32xf32>
    %11 = vector.extract_strided_slice %3 {offsets = [7, 0], sizes = [1, 32], strides = [1, 1]} : vector<9x128xf32> to vector<1x32xf32>
    %12 = vector.extract_strided_slice %3 {offsets = [8, 0], sizes = [1, 32], strides = [1, 1]} : vector<9x128xf32> to vector<1x32xf32>
    %c0_6 = arith.constant 0 : index
    %c0_7 = arith.constant 0 : index
    %c0_8 = arith.constant 0 : index
    %13 = vector.load %arg3[%c0_6, %c0_7, %c0_8] : memref<2x32x96xf32, #tpu.memory_space<vmem>>, vector<1x32x96xf32>
    %14 = vector.shape_cast %13 : vector<1x32x96xf32> to vector<32x96xf32>
    %cst = arith.constant dense<0.000000e+00> : vector<16x96xf32>
    %15 = tpu.matmul %0, %14, %cst {dimension_numbers = #tpu.dot_dimension_numbers<[1], [0], [0], [1], [0, 0, 1, 1], [], []>} : vector<16x32xf32>, vector<32x96xf32>, vector<16x96xf32> -> vector<16x96xf32>
    %16 = vector.broadcast %4 : vector<1x96xf32> to vector<16x96xf32>
    %17 = arith.addf %15, %16 : vector<16x96xf32>
    %18 = vector.extract_strided_slice %17 {offsets = [0, 0], sizes = [16, 32], strides = [1, 1]} : vector<16x96xf32> to vector<16x32xf32>
    %19 = vector.extract_strided_slice %17 {offsets = [0, 32], sizes = [16, 32], strides = [1, 1]} : vector<16x96xf32> to vector<16x32xf32>
    %20 = vector.extract_strided_slice %17 {offsets = [0, 64], sizes = [16, 32], strides = [1, 1]} : vector<16x96xf32> to vector<16x32xf32>
    %21 = vector.extract_strided_slice %18 {offsets = [0, 0], sizes = [16, 16], strides = [1, 1]} : vector<16x32xf32> to vector<16x16xf32>
    %22 = vector.extract_strided_slice %19 {offsets = [0, 0], sizes = [16, 16], strides = [1, 1]} : vector<16x32xf32> to vector<16x16xf32>
    %23 = tpu.transpose %22, [1, 0] : vector<16x16xf32> -> vector<16x16xf32>
    %cst_9 = arith.constant dense<0.000000e+00> : vector<16x16xf32>
    %24 = tpu.matmul %21, %23, %cst_9 {dimension_numbers = #tpu.dot_dimension_numbers<[1], [0], [0], [1], [0, 0, 1, 1], [], []>} : vector<16x16xf32>, vector<16x16xf32>, vector<16x16xf32> -> vector<16x16xf32>
    %cst_10 = arith.constant 2.500000e-01 : f32
    %25 = vector.broadcast %cst_10 : f32 to vector<16x16xf32>
    %26 = arith.mulf %24, %25 : vector<16x16xf32>
    %27 = arith.addf %26, %1 : vector<16x16xf32>
    %cst_11 = arith.constant dense<0xFF800000> : vector<16xf32>
    %28 = vector.multi_reduction <maximumf>, %27, %cst_11 [1] : vector<16x16xf32> to vector<16xf32>
    %29 = vector.shape_cast %28 : vector<16xf32> to vector<16x1xf32>
    %30 = vector.broadcast %29 : vector<16x1xf32> to vector<16x16xf32>
    %31 = arith.subf %27, %30 : vector<16x16xf32>
    %32 = math.exp %31 : vector<16x16xf32>
    %cst_12 = arith.constant dense<0.000000e+00> : vector<16xf32>
    %33 = vector.multi_reduction <add>, %32, %cst_12 [1] : vector<16x16xf32> to vector<16xf32>
    %34 = vector.shape_cast %33 : vector<16xf32> to vector<16x1xf32>
    %35 = vector.broadcast %34 : vector<16x1xf32> to vector<16x16xf32>
    %36 = arith.divf %32, %35 : vector<16x16xf32>
    %37 = vector.extract_strided_slice %20 {offsets = [0, 0], sizes = [16, 16], strides = [1, 1]} : vector<16x32xf32> to vector<16x16xf32>
    %cst_13 = arith.constant dense<0.000000e+00> : vector<16x16xf32>
    %38 = tpu.matmul %36, %37, %cst_13 {dimension_numbers = #tpu.dot_dimension_numbers<[1], [0], [0], [1], [0, 0, 1, 1], [], []>} : vector<16x16xf32>, vector<16x16xf32>, vector<16x16xf32> -> vector<16x16xf32>
    %39 = vector.extract_strided_slice %18 {offsets = [0, 16], sizes = [16, 16], strides = [1, 1]} : vector<16x32xf32> to vector<16x16xf32>
    %40 = vector.extract_strided_slice %19 {offsets = [0, 16], sizes = [16, 16], strides = [1, 1]} : vector<16x32xf32> to vector<16x16xf32>
    %41 = tpu.transpose %40, [1, 0] : vector<16x16xf32> -> vector<16x16xf32>
    %cst_14 = arith.constant dense<0.000000e+00> : vector<16x16xf32>
    %42 = tpu.matmul %39, %41, %cst_14 {dimension_numbers = #tpu.dot_dimension_numbers<[1], [0], [0], [1], [0, 0, 1, 1], [], []>} : vector<16x16xf32>, vector<16x16xf32>, vector<16x16xf32> -> vector<16x16xf32>
    %cst_15 = arith.constant 2.500000e-01 : f32
    %43 = vector.broadcast %cst_15 : f32 to vector<16x16xf32>
    %44 = arith.mulf %42, %43 : vector<16x16xf32>
    %45 = arith.addf %44, %1 : vector<16x16xf32>
    %cst_16 = arith.constant dense<0xFF800000> : vector<16xf32>
    %46 = vector.multi_reduction <maximumf>, %45, %cst_16 [1] : vector<16x16xf32> to vector<16xf32>
    %47 = vector.shape_cast %46 : vector<16xf32> to vector<16x1xf32>
    %48 = vector.broadcast %47 : vector<16x1xf32> to vector<16x16xf32>
    %49 = arith.subf %45, %48 : vector<16x16xf32>
    %50 = math.exp %49 : vector<16x16xf32>
    %cst_17 = arith.constant dense<0.000000e+00> : vector<16xf32>
    %51 = vector.multi_reduction <add>, %50, %cst_17 [1] : vector<16x16xf32> to vector<16xf32>
    %52 = vector.shape_cast %51 : vector<16xf32> to vector<16x1xf32>
    %53 = vector.broadcast %52 : vector<16x1xf32> to vector<16x16xf32>
    %54 = arith.divf %50, %53 : vector<16x16xf32>
    %55 = vector.extract_strided_slice %20 {offsets = [0, 16], sizes = [16, 16], strides = [1, 1]} : vector<16x32xf32> to vector<16x16xf32>
    %cst_18 = arith.constant dense<0.000000e+00> : vector<16x16xf32>
    %56 = tpu.matmul %54, %55, %cst_18 {dimension_numbers = #tpu.dot_dimension_numbers<[1], [0], [0], [1], [0, 0, 1, 1], [], []>} : vector<16x16xf32>, vector<16x16xf32>, vector<16x16xf32> -> vector<16x16xf32>
    %57 = tpu.concatenate %38, %56 in 1 : vector<16x16xf32>, vector<16x16xf32> -> vector<16x32xf32>
    %c0_19 = arith.constant 0 : index
    %c0_20 = arith.constant 0 : index
    %c0_21 = arith.constant 0 : index
    %58 = vector.load %arg4[%c0_19, %c0_20, %c0_21] : memref<2x32x32xf32, #tpu.memory_space<vmem>>, vector<1x32x32xf32>
    %59 = vector.shape_cast %58 : vector<1x32x32xf32> to vector<32x32xf32>
    %cst_22 = arith.constant dense<0.000000e+00> : vector<16x32xf32>
    %60 = tpu.matmul %57, %59, %cst_22 {dimension_numbers = #tpu.dot_dimension_numbers<[1], [0], [0], [1], [0, 0, 1, 1], [], []>} : vector<16x32xf32>, vector<32x32xf32>, vector<16x32xf32> -> vector<16x32xf32>
    %61 = vector.broadcast %5 : vector<1x32xf32> to vector<16x32xf32>
    %62 = arith.addf %60, %61 : vector<16x32xf32>
    %63 = arith.addf %0, %62 : vector<16x32xf32>
    %cst_23 = arith.constant dense<0.000000e+00> : vector<16xf32>
    %64 = vector.multi_reduction <add>, %63, %cst_23 [1] : vector<16x32xf32> to vector<16xf32>
    %65 = vector.shape_cast %64 : vector<16xf32> to vector<16x1xf32>
    %cst_24 = arith.constant 3.200000e+01 : f32
    %66 = vector.broadcast %cst_24 : f32 to vector<16x1xf32>
    %67 = arith.divf %65, %66 : vector<16x1xf32>
    %68 = vector.broadcast %67 : vector<16x1xf32> to vector<16x32xf32>
    %69 = arith.subf %63, %68 : vector<16x32xf32>
    %70 = arith.mulf %69, %69 : vector<16x32xf32>
    %cst_25 = arith.constant dense<0.000000e+00> : vector<16xf32>
    %71 = vector.multi_reduction <add>, %70, %cst_25 [1] : vector<16x32xf32> to vector<16xf32>
    %72 = vector.shape_cast %71 : vector<16xf32> to vector<16x1xf32>
    %cst_26 = arith.constant 3.200000e+01 : f32
    %73 = vector.broadcast %cst_26 : f32 to vector<16x1xf32>
    %74 = arith.divf %72, %73 : vector<16x1xf32>
    %75 = vector.broadcast %67 : vector<16x1xf32> to vector<16x32xf32>
    %76 = arith.subf %63, %75 : vector<16x32xf32>
    %cst_27 = arith.constant 9.99999974E-6 : f32
    %77 = vector.broadcast %cst_27 : f32 to vector<16x1xf32>
    %78 = arith.addf %74, %77 : vector<16x1xf32>
    %79 = math.rsqrt %78 : vector<16x1xf32>
    %80 = vector.broadcast %79 : vector<16x1xf32> to vector<16x32xf32>
    %81 = arith.mulf %76, %80 : vector<16x32xf32>
    %82 = vector.broadcast %9 : vector<1x32xf32> to vector<16x32xf32>
    %83 = arith.mulf %81, %82 : vector<16x32xf32>
    %84 = vector.broadcast %10 : vector<1x32xf32> to vector<16x32xf32>
    %85 = arith.addf %83, %84 : vector<16x32xf32>
    %86 = vector.broadcast %6 : vector<1x32xf32> to vector<16x32xf32>
    %87 = arith.mulf %85, %86 : vector<16x32xf32>
    %cst_28 = arith.constant dense<0.000000e+00> : vector<16xf32>
    %88 = vector.multi_reduction <add>, %87, %cst_28 [1] : vector<16x32xf32> to vector<16xf32>
    %89 = vector.shape_cast %88 : vector<16xf32> to vector<16x1xf32>
    %90 = arith.negf %89 : vector<16x1xf32>
    %91 = math.exp %90 : vector<16x1xf32>
    %cst_29 = arith.constant 1.000000e+00 : f32
    %92 = vector.broadcast %cst_29 : f32 to vector<16x1xf32>
    %93 = arith.addf %92, %91 : vector<16x1xf32>
    %94 = arith.divf %92, %93 : vector<16x1xf32>
    %c0_30 = arith.constant 0 : index
    %c0_31 = arith.constant 0 : index
    %c0_32 = arith.constant 0 : index
    %95 = vector.load %arg5[%c0_30, %c0_31, %c0_32] : memref<2x32x64xf32, #tpu.memory_space<vmem>>, vector<1x32x64xf32>
    %96 = vector.shape_cast %95 : vector<1x32x64xf32> to vector<32x64xf32>
    %cst_33 = arith.constant dense<0.000000e+00> : vector<16x64xf32>
    %97 = tpu.matmul %85, %96, %cst_33 {dimension_numbers = #tpu.dot_dimension_numbers<[1], [0], [0], [1], [0, 0, 1, 1], [], []>} : vector<16x32xf32>, vector<32x64xf32>, vector<16x64xf32> -> vector<16x64xf32>
    %98 = vector.broadcast %7 : vector<1x64xf32> to vector<16x64xf32>
    %99 = arith.addf %97, %98 : vector<16x64xf32>
    %100 = vector.broadcast %94 : vector<16x1xf32> to vector<16x64xf32>
    %101 = arith.mulf %99, %100 : vector<16x64xf32>
    %cst_34 = arith.constant 0.000000e+00 : f32
    %102 = vector.broadcast %cst_34 : f32 to vector<16x64xf32>
    %103 = arith.maximumf %101, %102 : vector<16x64xf32>
    %c0_35 = arith.constant 0 : index
    %c0_36 = arith.constant 0 : index
    %c0_37 = arith.constant 0 : index
    %104 = vector.load %arg6[%c0_35, %c0_36, %c0_37] : memref<2x64x32xf32, #tpu.memory_space<vmem>>, vector<1x64x32xf32>
    %105 = vector.shape_cast %104 : vector<1x64x32xf32> to vector<64x32xf32>
    %cst_38 = arith.constant dense<0.000000e+00> : vector<16x32xf32>
    %106 = tpu.matmul %103, %105, %cst_38 {dimension_numbers = #tpu.dot_dimension_numbers<[1], [0], [0], [1], [0, 0, 1, 1], [], []>} : vector<16x64xf32>, vector<64x32xf32>, vector<16x32xf32> -> vector<16x32xf32>
    %107 = vector.broadcast %8 : vector<1x32xf32> to vector<16x32xf32>
    %108 = arith.addf %106, %107 : vector<16x32xf32>
    %109 = arith.addf %85, %108 : vector<16x32xf32>
    %cst_39 = arith.constant dense<0.000000e+00> : vector<16xf32>
    %110 = vector.multi_reduction <add>, %109, %cst_39 [1] : vector<16x32xf32> to vector<16xf32>
    %111 = vector.shape_cast %110 : vector<16xf32> to vector<16x1xf32>
    %cst_40 = arith.constant 3.200000e+01 : f32
    %112 = vector.broadcast %cst_40 : f32 to vector<16x1xf32>
    %113 = arith.divf %111, %112 : vector<16x1xf32>
    %114 = vector.broadcast %113 : vector<16x1xf32> to vector<16x32xf32>
    %115 = arith.subf %109, %114 : vector<16x32xf32>
    %116 = arith.mulf %115, %115 : vector<16x32xf32>
    %cst_41 = arith.constant dense<0.000000e+00> : vector<16xf32>
    %117 = vector.multi_reduction <add>, %116, %cst_41 [1] : vector<16x32xf32> to vector<16xf32>
    %118 = vector.shape_cast %117 : vector<16xf32> to vector<16x1xf32>
    %cst_42 = arith.constant 3.200000e+01 : f32
    %119 = vector.broadcast %cst_42 : f32 to vector<16x1xf32>
    %120 = arith.divf %118, %119 : vector<16x1xf32>
    %121 = vector.broadcast %113 : vector<16x1xf32> to vector<16x32xf32>
    %122 = arith.subf %109, %121 : vector<16x32xf32>
    %cst_43 = arith.constant 9.99999974E-6 : f32
    %123 = vector.broadcast %cst_43 : f32 to vector<16x1xf32>
    %124 = arith.addf %120, %123 : vector<16x1xf32>
    %125 = math.rsqrt %124 : vector<16x1xf32>
    %126 = vector.broadcast %125 : vector<16x1xf32> to vector<16x32xf32>
    %127 = arith.mulf %122, %126 : vector<16x32xf32>
    %128 = vector.broadcast %11 : vector<1x32xf32> to vector<16x32xf32>
    %129 = arith.mulf %127, %128 : vector<16x32xf32>
    %130 = vector.broadcast %12 : vector<1x32xf32> to vector<16x32xf32>
    %131 = arith.addf %129, %130 : vector<16x32xf32>
    %c1 = arith.constant 1 : index
    %c0_44 = arith.constant 0 : index
    %c0_45 = arith.constant 0 : index
    %132 = vector.load %arg7[%c1, %c0_44, %c0_45] : memref<2x9x128xf32, #tpu.memory_space<vmem>>, vector<1x9x128xf32>
    %133 = vector.shape_cast %132 : vector<1x9x128xf32> to vector<9x128xf32>
    %134 = vector.extract_strided_slice %133 {offsets = [0, 0], sizes = [1, 96], strides = [1, 1]} : vector<9x128xf32> to vector<1x96xf32>
    %135 = vector.extract_strided_slice %133 {offsets = [1, 0], sizes = [1, 32], strides = [1, 1]} : vector<9x128xf32> to vector<1x32xf32>
    %136 = vector.extract_strided_slice %133 {offsets = [2, 0], sizes = [1, 32], strides = [1, 1]} : vector<9x128xf32> to vector<1x32xf32>
    %137 = vector.extract_strided_slice %133 {offsets = [3, 0], sizes = [1, 64], strides = [1, 1]} : vector<9x128xf32> to vector<1x64xf32>
    %138 = vector.extract_strided_slice %133 {offsets = [4, 0], sizes = [1, 32], strides = [1, 1]} : vector<9x128xf32> to vector<1x32xf32>
    %139 = vector.extract_strided_slice %133 {offsets = [5, 0], sizes = [1, 32], strides = [1, 1]} : vector<9x128xf32> to vector<1x32xf32>
    %140 = vector.extract_strided_slice %133 {offsets = [6, 0], sizes = [1, 32], strides = [1, 1]} : vector<9x128xf32> to vector<1x32xf32>
    %141 = vector.extract_strided_slice %133 {offsets = [7, 0], sizes = [1, 32], strides = [1, 1]} : vector<9x128xf32> to vector<1x32xf32>
    %142 = vector.extract_strided_slice %133 {offsets = [8, 0], sizes = [1, 32], strides = [1, 1]} : vector<9x128xf32> to vector<1x32xf32>
    %c1_46 = arith.constant 1 : index
    %c0_47 = arith.constant 0 : index
    %c0_48 = arith.constant 0 : index
    %143 = vector.load %arg3[%c1_46, %c0_47, %c0_48] : memref<2x32x96xf32, #tpu.memory_space<vmem>>, vector<1x32x96xf32>
    %144 = vector.shape_cast %143 : vector<1x32x96xf32> to vector<32x96xf32>
    %cst_49 = arith.constant dense<0.000000e+00> : vector<16x96xf32>
    %145 = tpu.matmul %131, %144, %cst_49 {dimension_numbers = #tpu.dot_dimension_numbers<[1], [0], [0], [1], [0, 0, 1, 1], [], []>} : vector<16x32xf32>, vector<32x96xf32>, vector<16x96xf32> -> vector<16x96xf32>
    %146 = vector.broadcast %134 : vector<1x96xf32> to vector<16x96xf32>
    %147 = arith.addf %145, %146 : vector<16x96xf32>
    %148 = vector.extract_strided_slice %147 {offsets = [0, 0], sizes = [16, 32], strides = [1, 1]} : vector<16x96xf32> to vector<16x32xf32>
    %149 = vector.extract_strided_slice %147 {offsets = [0, 32], sizes = [16, 32], strides = [1, 1]} : vector<16x96xf32> to vector<16x32xf32>
    %150 = vector.extract_strided_slice %147 {offsets = [0, 64], sizes = [16, 32], strides = [1, 1]} : vector<16x96xf32> to vector<16x32xf32>
    %151 = vector.extract_strided_slice %148 {offsets = [0, 0], sizes = [16, 16], strides = [1, 1]} : vector<16x32xf32> to vector<16x16xf32>
    %152 = vector.extract_strided_slice %149 {offsets = [0, 0], sizes = [16, 16], strides = [1, 1]} : vector<16x32xf32> to vector<16x16xf32>
    %153 = tpu.transpose %152, [1, 0] : vector<16x16xf32> -> vector<16x16xf32>
    %cst_50 = arith.constant dense<0.000000e+00> : vector<16x16xf32>
    %154 = tpu.matmul %151, %153, %cst_50 {dimension_numbers = #tpu.dot_dimension_numbers<[1], [0], [0], [1], [0, 0, 1, 1], [], []>} : vector<16x16xf32>, vector<16x16xf32>, vector<16x16xf32> -> vector<16x16xf32>
    %cst_51 = arith.constant 2.500000e-01 : f32
    %155 = vector.broadcast %cst_51 : f32 to vector<16x16xf32>
    %156 = arith.mulf %154, %155 : vector<16x16xf32>
    %157 = arith.addf %156, %1 : vector<16x16xf32>
    %cst_52 = arith.constant dense<0xFF800000> : vector<16xf32>
    %158 = vector.multi_reduction <maximumf>, %157, %cst_52 [1] : vector<16x16xf32> to vector<16xf32>
    %159 = vector.shape_cast %158 : vector<16xf32> to vector<16x1xf32>
    %160 = vector.broadcast %159 : vector<16x1xf32> to vector<16x16xf32>
    %161 = arith.subf %157, %160 : vector<16x16xf32>
    %162 = math.exp %161 : vector<16x16xf32>
    %cst_53 = arith.constant dense<0.000000e+00> : vector<16xf32>
    %163 = vector.multi_reduction <add>, %162, %cst_53 [1] : vector<16x16xf32> to vector<16xf32>
    %164 = vector.shape_cast %163 : vector<16xf32> to vector<16x1xf32>
    %165 = vector.broadcast %164 : vector<16x1xf32> to vector<16x16xf32>
    %166 = arith.divf %162, %165 : vector<16x16xf32>
    %167 = vector.extract_strided_slice %150 {offsets = [0, 0], sizes = [16, 16], strides = [1, 1]} : vector<16x32xf32> to vector<16x16xf32>
    %cst_54 = arith.constant dense<0.000000e+00> : vector<16x16xf32>
    %168 = tpu.matmul %166, %167, %cst_54 {dimension_numbers = #tpu.dot_dimension_numbers<[1], [0], [0], [1], [0, 0, 1, 1], [], []>} : vector<16x16xf32>, vector<16x16xf32>, vector<16x16xf32> -> vector<16x16xf32>
    %169 = vector.extract_strided_slice %148 {offsets = [0, 16], sizes = [16, 16], strides = [1, 1]} : vector<16x32xf32> to vector<16x16xf32>
    %170 = vector.extract_strided_slice %149 {offsets = [0, 16], sizes = [16, 16], strides = [1, 1]} : vector<16x32xf32> to vector<16x16xf32>
    %171 = tpu.transpose %170, [1, 0] : vector<16x16xf32> -> vector<16x16xf32>
    %cst_55 = arith.constant dense<0.000000e+00> : vector<16x16xf32>
    %172 = tpu.matmul %169, %171, %cst_55 {dimension_numbers = #tpu.dot_dimension_numbers<[1], [0], [0], [1], [0, 0, 1, 1], [], []>} : vector<16x16xf32>, vector<16x16xf32>, vector<16x16xf32> -> vector<16x16xf32>
    %cst_56 = arith.constant 2.500000e-01 : f32
    %173 = vector.broadcast %cst_56 : f32 to vector<16x16xf32>
    %174 = arith.mulf %172, %173 : vector<16x16xf32>
    %175 = arith.addf %174, %1 : vector<16x16xf32>
    %cst_57 = arith.constant dense<0xFF800000> : vector<16xf32>
    %176 = vector.multi_reduction <maximumf>, %175, %cst_57 [1] : vector<16x16xf32> to vector<16xf32>
    %177 = vector.shape_cast %176 : vector<16xf32> to vector<16x1xf32>
    %178 = vector.broadcast %177 : vector<16x1xf32> to vector<16x16xf32>
    %179 = arith.subf %175, %178 : vector<16x16xf32>
    %180 = math.exp %179 : vector<16x16xf32>
    %cst_58 = arith.constant dense<0.000000e+00> : vector<16xf32>
    %181 = vector.multi_reduction <add>, %180, %cst_58 [1] : vector<16x16xf32> to vector<16xf32>
    %182 = vector.shape_cast %181 : vector<16xf32> to vector<16x1xf32>
    %183 = vector.broadcast %182 : vector<16x1xf32> to vector<16x16xf32>
    %184 = arith.divf %180, %183 : vector<16x16xf32>
    %185 = vector.extract_strided_slice %150 {offsets = [0, 16], sizes = [16, 16], strides = [1, 1]} : vector<16x32xf32> to vector<16x16xf32>
    %cst_59 = arith.constant dense<0.000000e+00> : vector<16x16xf32>
    %186 = tpu.matmul %184, %185, %cst_59 {dimension_numbers = #tpu.dot_dimension_numbers<[1], [0], [0], [1], [0, 0, 1, 1], [], []>} : vector<16x16xf32>, vector<16x16xf32>, vector<16x16xf32> -> vector<16x16xf32>
    %187 = tpu.concatenate %168, %186 in 1 : vector<16x16xf32>, vector<16x16xf32> -> vector<16x32xf32>
    %c1_60 = arith.constant 1 : index
    %c0_61 = arith.constant 0 : index
    %c0_62 = arith.constant 0 : index
    %188 = vector.load %arg4[%c1_60, %c0_61, %c0_62] : memref<2x32x32xf32, #tpu.memory_space<vmem>>, vector<1x32x32xf32>
    %189 = vector.shape_cast %188 : vector<1x32x32xf32> to vector<32x32xf32>
    %cst_63 = arith.constant dense<0.000000e+00> : vector<16x32xf32>
    %190 = tpu.matmul %187, %189, %cst_63 {dimension_numbers = #tpu.dot_dimension_numbers<[1], [0], [0], [1], [0, 0, 1, 1], [], []>} : vector<16x32xf32>, vector<32x32xf32>, vector<16x32xf32> -> vector<16x32xf32>
    %191 = vector.broadcast %135 : vector<1x32xf32> to vector<16x32xf32>
    %192 = arith.addf %190, %191 : vector<16x32xf32>
    %193 = arith.addf %131, %192 : vector<16x32xf32>
    %cst_64 = arith.constant dense<0.000000e+00> : vector<16xf32>
    %194 = vector.multi_reduction <add>, %193, %cst_64 [1] : vector<16x32xf32> to vector<16xf32>
    %195 = vector.shape_cast %194 : vector<16xf32> to vector<16x1xf32>
    %cst_65 = arith.constant 3.200000e+01 : f32
    %196 = vector.broadcast %cst_65 : f32 to vector<16x1xf32>
    %197 = arith.divf %195, %196 : vector<16x1xf32>
    %198 = vector.broadcast %197 : vector<16x1xf32> to vector<16x32xf32>
    %199 = arith.subf %193, %198 : vector<16x32xf32>
    %200 = arith.mulf %199, %199 : vector<16x32xf32>
    %cst_66 = arith.constant dense<0.000000e+00> : vector<16xf32>
    %201 = vector.multi_reduction <add>, %200, %cst_66 [1] : vector<16x32xf32> to vector<16xf32>
    %202 = vector.shape_cast %201 : vector<16xf32> to vector<16x1xf32>
    %cst_67 = arith.constant 3.200000e+01 : f32
    %203 = vector.broadcast %cst_67 : f32 to vector<16x1xf32>
    %204 = arith.divf %202, %203 : vector<16x1xf32>
    %205 = vector.broadcast %197 : vector<16x1xf32> to vector<16x32xf32>
    %206 = arith.subf %193, %205 : vector<16x32xf32>
    %cst_68 = arith.constant 9.99999974E-6 : f32
    %207 = vector.broadcast %cst_68 : f32 to vector<16x1xf32>
    %208 = arith.addf %204, %207 : vector<16x1xf32>
    %209 = math.rsqrt %208 : vector<16x1xf32>
    %210 = vector.broadcast %209 : vector<16x1xf32> to vector<16x32xf32>
    %211 = arith.mulf %206, %210 : vector<16x32xf32>
    %212 = vector.broadcast %139 : vector<1x32xf32> to vector<16x32xf32>
    %213 = arith.mulf %211, %212 : vector<16x32xf32>
    %214 = vector.broadcast %140 : vector<1x32xf32> to vector<16x32xf32>
    %215 = arith.addf %213, %214 : vector<16x32xf32>
    %216 = vector.broadcast %136 : vector<1x32xf32> to vector<16x32xf32>
    %217 = arith.mulf %215, %216 : vector<16x32xf32>
    %cst_69 = arith.constant dense<0.000000e+00> : vector<16xf32>
    %218 = vector.multi_reduction <add>, %217, %cst_69 [1] : vector<16x32xf32> to vector<16xf32>
    %219 = vector.shape_cast %218 : vector<16xf32> to vector<16x1xf32>
    %220 = arith.negf %219 : vector<16x1xf32>
    %221 = math.exp %220 : vector<16x1xf32>
    %cst_70 = arith.constant 1.000000e+00 : f32
    %222 = vector.broadcast %cst_70 : f32 to vector<16x1xf32>
    %223 = arith.addf %222, %221 : vector<16x1xf32>
    %224 = arith.divf %222, %223 : vector<16x1xf32>
    %c1_71 = arith.constant 1 : index
    %c0_72 = arith.constant 0 : index
    %c0_73 = arith.constant 0 : index
    %225 = vector.load %arg5[%c1_71, %c0_72, %c0_73] : memref<2x32x64xf32, #tpu.memory_space<vmem>>, vector<1x32x64xf32>
    %226 = vector.shape_cast %225 : vector<1x32x64xf32> to vector<32x64xf32>
    %cst_74 = arith.constant dense<0.000000e+00> : vector<16x64xf32>
    %227 = tpu.matmul %215, %226, %cst_74 {dimension_numbers = #tpu.dot_dimension_numbers<[1], [0], [0], [1], [0, 0, 1, 1], [], []>} : vector<16x32xf32>, vector<32x64xf32>, vector<16x64xf32> -> vector<16x64xf32>
    %228 = vector.broadcast %137 : vector<1x64xf32> to vector<16x64xf32>
    %229 = arith.addf %227, %228 : vector<16x64xf32>
    %230 = vector.broadcast %224 : vector<16x1xf32> to vector<16x64xf32>
    %231 = arith.mulf %229, %230 : vector<16x64xf32>
    %cst_75 = arith.constant 0.000000e+00 : f32
    %232 = vector.broadcast %cst_75 : f32 to vector<16x64xf32>
    %233 = arith.maximumf %231, %232 : vector<16x64xf32>
    %c1_76 = arith.constant 1 : index
    %c0_77 = arith.constant 0 : index
    %c0_78 = arith.constant 0 : index
    %234 = vector.load %arg6[%c1_76, %c0_77, %c0_78] : memref<2x64x32xf32, #tpu.memory_space<vmem>>, vector<1x64x32xf32>
    %235 = vector.shape_cast %234 : vector<1x64x32xf32> to vector<64x32xf32>
    %cst_79 = arith.constant dense<0.000000e+00> : vector<16x32xf32>
    %236 = tpu.matmul %233, %235, %cst_79 {dimension_numbers = #tpu.dot_dimension_numbers<[1], [0], [0], [1], [0, 0, 1, 1], [], []>} : vector<16x64xf32>, vector<64x32xf32>, vector<16x32xf32> -> vector<16x32xf32>
    %237 = vector.broadcast %138 : vector<1x32xf32> to vector<16x32xf32>
    %238 = arith.addf %236, %237 : vector<16x32xf32>
    %239 = arith.addf %215, %238 : vector<16x32xf32>
    %cst_80 = arith.constant dense<0.000000e+00> : vector<16xf32>
    %240 = vector.multi_reduction <add>, %239, %cst_80 [1] : vector<16x32xf32> to vector<16xf32>
    %241 = vector.shape_cast %240 : vector<16xf32> to vector<16x1xf32>
    %cst_81 = arith.constant 3.200000e+01 : f32
    %242 = vector.broadcast %cst_81 : f32 to vector<16x1xf32>
    %243 = arith.divf %241, %242 : vector<16x1xf32>
    %244 = vector.broadcast %243 : vector<16x1xf32> to vector<16x32xf32>
    %245 = arith.subf %239, %244 : vector<16x32xf32>
    %246 = arith.mulf %245, %245 : vector<16x32xf32>
    %cst_82 = arith.constant dense<0.000000e+00> : vector<16xf32>
    %247 = vector.multi_reduction <add>, %246, %cst_82 [1] : vector<16x32xf32> to vector<16xf32>
    %248 = vector.shape_cast %247 : vector<16xf32> to vector<16x1xf32>
    %cst_83 = arith.constant 3.200000e+01 : f32
    %249 = vector.broadcast %cst_83 : f32 to vector<16x1xf32>
    %250 = arith.divf %248, %249 : vector<16x1xf32>
    %251 = vector.broadcast %243 : vector<16x1xf32> to vector<16x32xf32>
    %252 = arith.subf %239, %251 : vector<16x32xf32>
    %cst_84 = arith.constant 9.99999974E-6 : f32
    %253 = vector.broadcast %cst_84 : f32 to vector<16x1xf32>
    %254 = arith.addf %250, %253 : vector<16x1xf32>
    %255 = math.rsqrt %254 : vector<16x1xf32>
    %256 = vector.broadcast %255 : vector<16x1xf32> to vector<16x32xf32>
    %257 = arith.mulf %252, %256 : vector<16x32xf32>
    %258 = vector.broadcast %141 : vector<1x32xf32> to vector<16x32xf32>
    %259 = arith.mulf %257, %258 : vector<16x32xf32>
    %260 = vector.broadcast %142 : vector<1x32xf32> to vector<16x32xf32>
    %261 = arith.addf %259, %260 : vector<16x32xf32>
    %c0_85 = arith.constant 0 : index
    %c0_86 = arith.constant 0 : index
    %262 = vector.load %arg8[%c0_85, %c0_86] : memref<16x32xf32, #tpu.memory_space<vmem>>, vector<16x32xf32>
    tpu.vector_store %arg8[%c0_85, %c0_86], %261 {strides = array<i32>} : memref<16x32xf32, #tpu.memory_space<vmem>>, vector<16x32xf32>,
    return
  }
  func.func @transform_0(%arg0: i32) -> (i32, i32) {
    %c0_i32 = arith.constant 0 : i32
    %c0_i32_0 = arith.constant 0 : i32
    %c0_i32_1 = arith.constant 0 : i32
    return %c0_i32, %c0_i32_0 : i32, i32
  }
  func.func @transform_1(%arg0: i32) -> (i32, i32) {
    %c0_i32 = arith.constant 0 : i32
    %c0_i32_0 = arith.constant 0 : i32
    %c0_i32_1 = arith.constant 0 : i32
    return %c0_i32, %c0_i32_0 : i32, i32
  }
  func.func @transform_2(%arg0: i32) -> (i32, i32, i32) {
    %c0_i32 = arith.constant 0 : i32
    %c0_i32_0 = arith.constant 0 : i32
    %c0_i32_1 = arith.constant 0 : i32
    %c0_i32_2 = arith.constant 0 : i32
    return %c0_i32, %c0_i32_0, %c0_i32_1 : i32, i32, i32
  }
  func.func @transform_3(%arg0: i32) -> (i32, i32, i32) {
    %c0_i32 = arith.constant 0 : i32
    %c0_i32_0 = arith.constant 0 : i32
    %c0_i32_1 = arith.constant 0 : i32
    %c0_i32_2 = arith.constant 0 : i32
    return %c0_i32, %c0_i32_0, %c0_i32_1 : i32, i32, i32
  }
  func.func @transform_4(%arg0: i32) -> (i32, i32, i32) {
    %c0_i32 = arith.constant 0 : i32
    %c0_i32_0 = arith.constant 0 : i32
    %c0_i32_1 = arith.constant 0 : i32
    %c0_i32_2 = arith.constant 0 : i32
    return %c0_i32, %c0_i32_0, %c0_i32_1 : i32, i32, i32
  }
  func.func @transform_5(%arg0: i32) -> (i32, i32, i32) {
    %c0_i32 = arith.constant 0 : i32
    %c0_i32_0 = arith.constant 0 : i32
    %c0_i32_1 = arith.constant 0 : i32
    %c0_i32_2 = arith.constant 0 : i32
    return %c0_i32, %c0_i32_0, %c0_i32_1 : i32, i32, i32
  }
  func.func @transform_6(%arg0: i32) -> (i32, i32, i32) {
    %c0_i32 = arith.constant 0 : i32
    %c0_i32_0 = arith.constant 0 : i32
    %c0_i32_1 = arith.constant 0 : i32
    %c0_i32_2 = arith.constant 0 : i32
    return %c0_i32, %c0_i32_0, %c0_i32_1 : i32, i32, i32
  }
  func.func @transform_7(%arg0: i32) -> (i32, i32) {
    %c0_i32 = arith.constant 0 : i32
    %c0_i32_0 = arith.constant 0 : i32
    %c0_i32_1 = arith.constant 0 : i32
    return %c0_i32, %c0_i32_0 : i32, i32
  }
}

</mosaic_0001>

<llo_original>
// kernel: tpu_custom_call.1
$region0: #{tpu_custom_call.1}
  #allocation0 [shape = 'u32[]', space=smem, size = 0x4, offset = 0x4, fixed_abs, tag = 'smem constant byte address 0x4 - core index']
  #allocation1 [shape = 'u32[72,128]{1,0:T(1,128)}', space=vmem, size = 0x9000, scoped, tag = 'internal scratch']
  %s0 = inlined_call_operand.vmem [shape: f32[16,32], index: 0, kind: input, shape index: {}]
  %s1 = inlined_call_operand.vmem [shape: f32[16,16], index: 1, kind: input, shape index: {}]
  %s2 = inlined_call_operand.vmem [shape: f32[2,32,96], index: 2, kind: input, shape index: {}]
  %s3 = inlined_call_operand.vmem [shape: f32[2,32,32], index: 3, kind: input, shape index: {}]
  %s4 = inlined_call_operand.vmem [shape: f32[2,32,64], index: 4, kind: input, shape index: {}]
  %s5 = inlined_call_operand.vmem [shape: f32[2,64,32], index: 5, kind: input, shape index: {}]
  %s6 = inlined_call_operand.vmem [shape: f32[2,9,128], index: 6, kind: input, shape index: {}]
  %s7 = inlined_call_operand.hbm [shape: f32[16,32], index: 7, kind: output, shape index: {}]
  %s8 = sld [smem:[#allocation0]]
  $region38: #{tpu_custom_call.1} parent=0
    _
  %s10 = ssub.s32 1, %s8
  %s11 = scalar_select 0, %s10, %s8
  $region1: #{tpu_custom_call.1} parent=0
    #allocation2 [shape = 'u8[8192]{0}', space=vmem, size = 0x2000, scoped, tag = 'output window, operand 0, single buffered']
    #allocation3 [shape = 's32[1]{0}', space=sflag, size = 0x4, scoped, tag = 'scoped memory for tpu_custom_call.1']
    %12 = vsyncpa [#allocation3], 0
    // Predicated region
    $region2: #{tpu_custom_call.1} parent=1 // pred_check
      _
    $region3: #{tpu_custom_call.1} parent=1 // pred_check_branch
      %14 = sbr.rel (0) target = $region5
    $region4: #{tpu_custom_call.1} parent=1 // pred_region
      _
    $region5: #{tpu_custom_call.1} parent=1 // pred_fallthru
      _
    // Predicated region
    $region6: #{tpu_custom_call.1} parent=1 // pred_check
      _
    $region7: #{tpu_custom_call.1} parent=1 // pred_check_branch
      %16 = sbr.rel (0) target = $region9
    $region8: #{tpu_custom_call.1} parent=1 // pred_region
      _
    $region9: #{tpu_custom_call.1} parent=1 // pred_fallthru
      _
    // Predicated region
    $region10: #{tpu_custom_call.1} parent=1 // pred_check
      _
    $region11: #{tpu_custom_call.1} parent=1 // pred_check_branch
      %18 = sbr.rel (0) target = $region13
    $region12: #{tpu_custom_call.1} parent=1 // pred_region
      _
    $region13: #{tpu_custom_call.1} parent=1 // pred_fallthru
      _
    // Predicated region
    $region14: #{tpu_custom_call.1} parent=1 // pred_check
      _
    $region15: #{tpu_custom_call.1} parent=1 // pred_check_branch
      %20 = sbr.rel (0) target = $region17
    $region16: #{tpu_custom_call.1} parent=1 // pred_region
      _
    $region17: #{tpu_custom_call.1} parent=1 // pred_fallthru
      _
    // Predicated region
    $region18: #{tpu_custom_call.1} parent=1 // pred_check
      _
    $region19: #{tpu_custom_call.1} parent=1 // pred_check_branch
      %22 = sbr.rel (0) target = $region21
    $region20: #{tpu_custom_call.1} parent=1 // pred_region
      _
    $region21: #{tpu_custom_call.1} parent=1 // pred_fallthru
      _
    // Predicated region
    $region22: #{tpu_custom_call.1} parent=1 // pred_check
      _
    $region23: #{tpu_custom_call.1} parent=1 // pred_check_branch
      %24 = sbr.rel (0) target = $region25
    $region24: #{tpu_custom_call.1} parent=1 // pred_region
      _
    $region25: #{tpu_custom_call.1} parent=1 // pred_fallthru
      _
    // Predicated region
    $region26: #{tpu_custom_call.1} parent=1 // pred_check
      _
    $region27: #{tpu_custom_call.1} parent=1 // pred_check_branch
      %26 = sbr.rel (0) target = $region29
    $region28: #{tpu_custom_call.1} parent=1 // pred_region
      _
    $region29: #{tpu_custom_call.1} parent=1 // pred_fallthru
      _
    %v27 = vld [vmem:[%s0] sm:$0xff]
    %v28 = vld [vmem:[%s0 + $0x8] sm:$0xff]
    %v29 = vld [vmem:[%s1] sm:$0xff]
    %v30 = vld [vmem:[%s1 + $0x8] sm:$0xff]
    %v31 = vld [vmem:[%s6] sm:$0xff]
    %v32 = vld [vmem:[%s6 + $0x8] sm:$0x1]
    %v33 = vld [vmem:[%s2] sm:$0xff]
    %v34 = vld [vmem:[%s2 + $0x8] sm:$0xff]
    %v35 = vld [vmem:[%s2 + $0x10] sm:$0xff]
    %v36 = vld [vmem:[%s2 + $0x18] sm:$0xff]
    %v37 = vperm.slane %v31, 0
    %vm38 = vcmask 261120
    %v40 = vsel %vm38, %v27, 0
    %v43 = vsel %vm38, %v28, 0
    %45 = vmatpush.msra.mxu0 0.0
    %46 = vmatpush.msra.mxu0 0.0
    %47 = vmatpush.msra.mxu0 0.0
    %48 = vmatpush.msra.mxu0 0.0
    %49 = vmatpush.msra.mxu0 0.0
    %50 = vmatpush.msra.mxu0 0.0
    %51 = vmatpush.msra.mxu0 0.0
    %52 = vmatpush.msra.mxu0 0.0
    %53 = vmatpush.msra.mxu0 0.0
    %54 = vmatpush.msra.mxu0 0.0
    %55 = vmatpush.msra.mxu0 0.0
    %56 = vmatpush.msra.mxu0 0.0
    %57 = vmatpush.msra.mxu0 %v36
    %58 = vmatpush.msra.mxu0 %v35
    %59 = vmatpush.msra.mxu0 %v34
    %60 = vmatpush.msra.mxu0 %v33
    %61 = vmatmul.f32.gmra.mxu0 %v40
    %v62 = vpop.f32.mrf.mxu0
    %v63 = vadd.f32 %v37, %v62
    %64 = vmatmul.f32.gmra.mxu0 %v43
    %v65 = vpop.f32.mrf.mxu0
    %v66 = vadd.f32 %v37, %v65
    %67 = vdwg.mxu0
    %70 = vrot.lane.b32.xlu0 %v63, 96
    %v71 = vpop.permute.xlu0 %70
    %72 = vrot.lane.b32.xlu0 %v66, 96
    %v73 = vpop.permute.xlu0 %72
    %vm74 = vcmask 130048
    %v75 = vsel %vm74, %v63, 0
    %v77 = vsel %vm74, %v66, 0
    %v79 = vsel %vm74, %v71, 0
    %v81 = vsel %vm74, %v73, 0
    %83 = vmatpush.xpose.msra.mxu0 0.0
    %84 = vmatpush.xpose.msra.mxu0 0.0
    %85 = vmatpush.xpose.msra.mxu0 0.0
    %86 = vmatpush.xpose.msra.mxu0 0.0
    %87 = vmatpush.xpose.msra.mxu0 0.0
    %88 = vmatpush.xpose.msra.mxu0 0.0
    %89 = vmatpush.xpose.msra.mxu0 0.0
    %90 = vmatpush.xpose.msra.mxu0 0.0
    %91 = vmatpush.xpose.msra.mxu0 0.0
    %92 = vmatpush.xpose.msra.mxu0 0.0
    %93 = vmatpush.xpose.msra.mxu0 0.0
    %94 = vmatpush.xpose.msra.mxu0 0.0
    %95 = vmatpush.xpose.msra.mxu0 0.0
    %96 = vmatpush.xpose.msra.mxu0 0.0
    %97 = vmatpush.xpose.msra.mxu0 %v81
    %98 = vmatpush.xpose.msra.mxu0 %v79
    %99 = vmatmul.f32.gmra.mxu0 %v75
    %v100 = vpop.f32.mrf.mxu0
    %v101 = vadd.f32 0.0, %v100
    %102 = vmatmul.f32.gmra.mxu0 %v77
    %v103 = vpop.f32.mrf.mxu0
    %v104 = vadd.f32 0.0, %v103
    %105 = vdwg.mxu0
    %v106 = vmul.f32 %v101, 0.25
    %v107 = vmul.f32 %v104, 0.25
    %v108 = vadd.f32 %v106, %v29
    %v109 = vadd.f32 %v107, %v30
    %v110 = vsel %vm74, %v108, -inf
    %111 = vmax.xlane.f32.xlu0 %v110
    %v112 = vpop.xlane.xlu0 %111
    %v113 = vsel %vm74, %v109, -inf
    %114 = vmax.xlane.f32.xlu0 %v113
    %v115 = vpop.xlane.xlu0 %114
    %v116 = vsub.f32 %v108, %v112
    %v117 = vsub.f32 %v109, %v115
    %v118 = vmul.f32 %v116, 1.442695
    %v119 = vpow.pop %v118
    %v120 = vmul.f32 %v117, 1.442695
    %v121 = vpow.pop %v120
    %v122 = vsel %vm74, %v119, 0.0
    %123 = vadd.xlane.f32.xlu0 %v122
    %v124 = vpop.xlane.xlu0 %123
    %v125 = vsel %vm74, %v121, 0.0
    %126 = vadd.xlane.f32.xlu0 %v125
    %v127 = vpop.xlane.xlu0 %126
    %v128 = vrcp.pop %v124
    %v129 = vmul.f32 %v124, %v128
    %v130 = vsub.f32 1.0, %v129
    %v131 = vmul.f32 %v128, %v130
    %v132 = vadd.f32 %v128, %v131
    %vm133 = vweird.f32 %v124
    %vm134 = vweird.f32 %v128
    %vm135 = vmor %vm133, %vm134
    %v136 = vsel %vm135, %v128, %v132
    %v137 = vand.u32 2147483647, %v124
    %vm138 = vcmp.eq.f32.partialorder %v137, 8.507059e+37
    %v139 = vand.u32 %v124, 2147483648
    %v140 = vor.u32 1.1754944e-38, %v139
    %v141 = vsel %vm138, %v140, %v136
    %v142 = vmul.f32 %v119, %v141
    %v143 = vrcp.pop %v127
    %v144 = vmul.f32 %v127, %v143
    %v145 = vsub.f32 1.0, %v144
    %v146 = vmul.f32 %v143, %v145
    %v147 = vadd.f32 %v143, %v146
    %vm148 = vweird.f32 %v127
    %vm149 = vweird.f32 %v143
    %vm150 = vmor %vm148, %vm149
    %v151 = vsel %vm150, %v143, %v147
    %v152 = vand.u32 2147483647, %v127
    %vm153 = vcmp.eq.f32.partialorder %v152, 8.507059e+37
    %v154 = vand.u32 %v127, 2147483648
    %v155 = vor.u32 1.1754944e-38, %v154
    %v156 = vsel %vm153, %v155, %v151
    %v157 = vmul.f32 %v121, %v156
    %158 = vrot.lane.b32.xlu0 %v63, 64
    %v159 = vpop.permute.xlu0 %158
    %160 = vrot.lane.b32.xlu0 %v66, 64
    %v161 = vpop.permute.xlu0 %160
    %v165 = vsel %vm74, %v142, 0
    %v168 = vsel %vm74, %v157, 0
    %170 = vmatpush.msra.mxu0 0.0
    %171 = vmatpush.msra.mxu0 0.0
    %172 = vmatpush.msra.mxu0 0.0
    %173 = vmatpush.msra.mxu0 0.0
    %174 = vmatpush.msra.mxu0 0.0
    %175 = vmatpush.msra.mxu0 0.0
    %176 = vmatpush.msra.mxu0 0.0
    %177 = vmatpush.msra.mxu0 0.0
    %178 = vmatpush.msra.mxu0 0.0
    %179 = vmatpush.msra.mxu0 0.0
    %180 = vmatpush.msra.mxu0 0.0
    %181 = vmatpush.msra.mxu0 0.0
    %182 = vmatpush.msra.mxu0 0.0
    %183 = vmatpush.msra.mxu0 0.0
    %184 = vmatpush.msra.mxu0 %v161
    %185 = vmatpush.msra.mxu0 %v159
    %186 = vmatmul.f32.gmra.mxu0 %v165
    %v187 = vpop.f32.mrf.mxu0
    %v188 = vadd.f32 0.0, %v187
    %189 = vmatmul.f32.gmra.mxu0 %v168
    %v190 = vpop.f32.mrf.mxu0
    %v191 = vadd.f32 0.0, %v190
    %192 = vdwg.mxu0
    %193 = vrot.lane.b32.xlu0 %v63, 112
    %v194 = vpop.permute.xlu0 %193
    %195 = vrot.lane.b32.xlu0 %v66, 112
    %v196 = vpop.permute.xlu0 %195
    %197 = vrot.lane.b32.xlu0 %v63, 80
    %v198 = vpop.permute.xlu0 %197
    %199 = vrot.lane.b32.xlu0 %v66, 80
    %v200 = vpop.permute.xlu0 %199
    %v201 = vsel %vm74, %v194, 0
    %v203 = vsel %vm74, %v196, 0
    %v205 = vsel %vm74, %v198, 0
    %v207 = vsel %vm74, %v200, 0
    %209 = vmatpush.xpose.msra.mxu0 0.0
    %210 = vmatpush.xpose.msra.mxu0 0.0
    %211 = vmatpush.xpose.msra.mxu0 0.0
    %212 = vmatpush.xpose.msra.mxu0 0.0
    %213 = vmatpush.xpose.msra.mxu0 0.0
    %214 = vmatpush.xpose.msra.mxu0 0.0
    %215 = vmatpush.xpose.msra.mxu0 0.0
    %216 = vmatpush.xpose.msra.mxu0 0.0
    %217 = vmatpush.xpose.msra.mxu0 0.0
    %218 = vmatpush.xpose.msra.mxu0 0.0
    %219 = vmatpush.xpose.msra.mxu0 0.0
    %220 = vmatpush.xpose.msra.mxu0 0.0
    %221 = vmatpush.xpose.msra.mxu0 0.0
    %222 = vmatpush.xpose.msra.mxu0 0.0
    %223 = vmatpush.xpose.msra.mxu0 %v207
    %224 = vmatpush.xpose.msra.mxu0 %v205
    %225 = vmatmul.f32.gmra.mxu0 %v201
    %v226 = vpop.f32.mrf.mxu0
    %v227 = vadd.f32 0.0, %v226
    %228 = vmatmul.f32.gmra.mxu0 %v203
    %v229 = vpop.f32.mrf.mxu0
    %v230 = vadd.f32 0.0, %v229
    %231 = vdwg.mxu0
    %v232 = vmul.f32 %v227, 0.25
    %v233 = vmul.f32 %v230, 0.25
    %v234 = vadd.f32 %v232, %v29
    %v235 = vadd.f32 %v233, %v30
    %v236 = vsel %vm74, %v234, -inf
    %237 = vmax.xlane.f32.xlu0 %v236
    %v238 = vpop.xlane.xlu0 %237
    %v239 = vsel %vm74, %v235, -inf
    %240 = vmax.xlane.f32.xlu0 %v239
    %v241 = vpop.xlane.xlu0 %240
    %v242 = vsub.f32 %v234, %v238
    %v243 = vsub.f32 %v235, %v241
    %v244 = vmul.f32 %v242, 1.442695
    %v245 = vpow.pop %v244
    %v246 = vmul.f32 %v243, 1.442695
    %v247 = vpow.pop %v246
    %v248 = vsel %vm74, %v245, 0.0
    %249 = vadd.xlane.f32.xlu0 %v248
    %v250 = vpop.xlane.xlu0 %249
    %v251 = vsel %vm74, %v247, 0.0
    %252 = vadd.xlane.f32.xlu0 %v251
    %v253 = vpop.xlane.xlu0 %252
    %v254 = vrcp.pop %v250
    %v255 = vmul.f32 %v250, %v254
    %v256 = vsub.f32 1.0, %v255
    %v257 = vmul.f32 %v254, %v256
    %v258 = vadd.f32 %v254, %v257
    %vm259 = vweird.f32 %v250
    %vm260 = vweird.f32 %v254
    %vm261 = vmor %vm259, %vm260
    %v262 = vsel %vm261, %v254, %v258
    %v263 = vand.u32 2147483647, %v250
    %vm264 = vcmp.eq.f32.partialorder %v263, 8.507059e+37
    %v265 = vand.u32 %v250, 2147483648
    %v266 = vor.u32 1.1754944e-38, %v265
    %v267 = vsel %vm264, %v266, %v262
    %v268 = vmul.f32 %v245, %v267
    %v269 = vrcp.pop %v253
    %v270 = vmul.f32 %v253, %v269
    %v271 = vsub.f32 1.0, %v270
    %v272 = vmul.f32 %v269, %v271
    %v273 = vadd.f32 %v269, %v272
    %vm274 = vweird.f32 %v253
    %vm275 = vweird.f32 %v269
    %vm276 = vmor %vm274, %vm275
    %v277 = vsel %vm276, %v269, %v273
    %v278 = vand.u32 2147483647, %v253
    %vm279 = vcmp.eq.f32.partialorder %v278, 8.507059e+37
    %v280 = vand.u32 %v253, 2147483648
    %v281 = vor.u32 1.1754944e-38, %v280
    %v282 = vsel %vm279, %v281, %v277
    %v283 = vmul.f32 %v247, %v282
    %284 = vrot.lane.b32.xlu0 %v63, 48
    %v285 = vpop.permute.xlu0 %284
    %286 = vrot.lane.b32.xlu0 %v66, 48
    %v287 = vpop.permute.xlu0 %286
    %v291 = vsel %vm74, %v268, 0
    %v294 = vsel %vm74, %v283, 0
    %296 = vmatpush.msra.mxu0 0.0
    %297 = vmatpush.msra.mxu0 0.0
    %298 = vmatpush.msra.mxu0 0.0
    %299 = vmatpush.msra.mxu0 0.0
    %300 = vmatpush.msra.mxu0 0.0
    %301 = vmatpush.msra.mxu0 0.0
    %302 = vmatpush.msra.mxu0 0.0
    %303 = vmatpush.msra.mxu0 0.0
    %304 = vmatpush.msra.mxu0 0.0
    %305 = vmatpush.msra.mxu0 0.0
    %306 = vmatpush.msra.mxu0 0.0
    %307 = vmatpush.msra.mxu0 0.0
    %308 = vmatpush.msra.mxu0 0.0
    %309 = vmatpush.msra.mxu0 0.0
    %310 = vmatpush.msra.mxu0 %v287
    %311 = vmatpush.msra.mxu0 %v285
    %312 = vmatmul.f32.gmra.mxu0 %v291
    %v313 = vpop.f32.mrf.mxu0
    %v314 = vadd.f32 0.0, %v313
    %315 = vmatmul.f32.gmra.mxu0 %v294
    %v316 = vpop.f32.mrf.mxu0
    %v317 = vadd.f32 0.0, %v316
    %318 = vdwg.mxu0
    %321 = vrot.lane.b32.xlu0 %v314, 16
    %v322 = vpop.permute.xlu0 %321
    %323 = vrot.lane.b32.xlu0 %v317, 16
    %v324 = vpop.permute.xlu0 %323
    %v327 = vsel %vm74, %v188, %v322
    %v328 = vsel %vm74, %v191, %v324
    %v329 = vld [vmem:[%s3] sm:$0xff]
    %v330 = vld [vmem:[%s3 + $0x8] sm:$0xff]
    %v331 = vld [vmem:[%s3 + $0x10] sm:$0xff]
    %v332 = vld [vmem:[%s3 + $0x18] sm:$0xff]
    %v333 = vperm.slane %v31, 1
    %v335 = vsel %vm38, %v327, 0
    %v338 = vsel %vm38, %v328, 0
    %340 = vmatpush.msra.mxu0 0.0
    %341 = vmatpush.msra.mxu0 0.0
    %342 = vmatpush.msra.mxu0 0.0
    %343 = vmatpush.msra.mxu0 0.0
    %344 = vmatpush.msra.mxu0 0.0
    %345 = vmatpush.msra.mxu0 0.0
    %346 = vmatpush.msra.mxu0 0.0
    %347 = vmatpush.msra.mxu0 0.0
    %348 = vmatpush.msra.mxu0 0.0
    %349 = vmatpush.msra.mxu0 0.0
    %350 = vmatpush.msra.mxu0 0.0
    %351 = vmatpush.msra.mxu0 0.0
    %352 = vmatpush.msra.mxu0 %v332
    %353 = vmatpush.msra.mxu0 %v331
    %354 = vmatpush.msra.mxu0 %v330
    %355 = vmatpush.msra.mxu0 %v329
    %356 = vmatmul.f32.gmra.mxu0 %v335
    %v357 = vpop.f32.mrf.mxu0
    %v358 = vadd.f32 %v333, %v357
    %359 = vmatmul.f32.gmra.mxu0 %v338
    %v360 = vpop.f32.mrf.mxu0
    %v361 = vadd.f32 %v333, %v360
    %362 = vdwg.mxu0
    %v363 = vadd.f32 %v27, %v358
    %v364 = vadd.f32 %v28, %v361
    %v365 = vsel %vm38, %v363, 0.0
    %366 = vadd.xlane.f32.xlu0 %v365
    %v367 = vpop.xlane.xlu0 %366
    %v368 = vsel %vm38, %v364, 0.0
    %369 = vadd.xlane.f32.xlu0 %v368
    %v370 = vpop.xlane.xlu0 %369
    %v371 = vrcp.pop 32.0
    %v372 = vmul.f32 32.0, %v371
    %v373 = vsub.f32 1.0, %v372
    %v374 = vmul.f32 %v371, %v373
    %v375 = vadd.f32 %v371, %v374
    %vm376 = vweird.f32 %v371
    %v377 = vsel %vm376, %v371, %v375
    %v378 = vmul.f32 %v367, %v377
    %v379 = vmul.f32 %v370, %v377
    %v380 = vsub.f32 %v363, %v378
    %v381 = vsub.f32 %v364, %v379
    %v382 = vmul.f32 %v380, %v380
    %v383 = vmul.f32 %v381, %v381
    %v384 = vsel %vm38, %v382, 0.0
    %385 = vadd.xlane.f32.xlu0 %v384
    %v386 = vpop.xlane.xlu0 %385
    %v387 = vsel %vm38, %v383, 0.0
    %388 = vadd.xlane.f32.xlu0 %v387
    %v389 = vpop.xlane.xlu0 %388
    %v390 = vmul.f32 %v386, %v377
    %v391 = vmul.f32 %v389, %v377
    %v392 = vadd.f32 %v390, 1e-05
    %v393 = vadd.f32 %v391, 1e-05
    %v394 = vrsqrt.pop %v392
    %v395 = vmul.f32 %v394, %v392
    %v396 = vmul.f32 %v395, %v394
    %v397 = vmul.f32 0.5, %v396
    %v398 = vsub.f32 1.5, %v397
    %v399 = vmul.f32 %v394, %v398
    %vm400 = vweird.f32 %v392
    %vm401 = vweird.f32 %v394
    %vm402 = vmor %vm400, %vm401
    %v403 = vsel %vm402, %v394, %v399
    %v404 = vrsqrt.pop %v393
    %v405 = vmul.f32 %v404, %v393
    %v406 = vmul.f32 %v405, %v404
    %v407 = vmul.f32 0.5, %v406
    %v408 = vsub.f32 1.5, %v407
    %v409 = vmul.f32 %v404, %v408
    %vm410 = vweird.f32 %v393
    %vm411 = vweird.f32 %v404
    %vm412 = vmor %vm410, %vm411
    %v413 = vsel %vm412, %v404, %v409
    %v414 = vmul.f32 %v380, %v403
    %v415 = vmul.f32 %v381, %v413
    %v416 = vperm.slane %v31, 5
    %v417 = vmul.f32 %v414, %v416
    %v418 = vmul.f32 %v415, %v416
    %v419 = vperm.slane %v31, 6
    %v420 = vadd.f32 %v417, %v419
    %v421 = vadd.f32 %v418, %v419
    %v422 = vperm.slane %v31, 2
    %v423 = vmul.f32 %v420, %v422
    %v424 = vmul.f32 %v421, %v422
    %v425 = vsel %vm38, %v423, 0.0
    %426 = vadd.xlane.f32.xlu0 %v425
    %v427 = vpop.xlane.xlu0 %426
    %v428 = vsel %vm38, %v424, 0.0
    %429 = vadd.xlane.f32.xlu0 %v428
    %v430 = vpop.xlane.xlu0 %429
    %v431 = vxor.u32 %v427, 2147483648
    %v432 = vxor.u32 %v430, 2147483648
    %v433 = vmul.f32 %v431, 1.442695
    %v434 = vpow.pop %v433
    %v435 = vmul.f32 %v432, 1.442695
    %v436 = vpow.pop %v435
    %v437 = vadd.f32 %v434, 1.0
    %v438 = vadd.f32 %v436, 1.0
    %v439 = vrcp.pop %v437
    %v440 = vmul.f32 %v437, %v439
    %v441 = vsub.f32 1.0, %v440
    %v442 = vmul.f32 %v439, %v441
    %v443 = vadd.f32 %v439, %v442
    %vm444 = vweird.f32 %v437
    %vm445 = vweird.f32 %v439
    %vm446 = vmor %vm444, %vm445
    %v447 = vsel %vm446, %v439, %v443
    %v448 = vand.u32 2147483647, %v437
    %vm449 = vcmp.eq.f32.partialorder %v448, 8.507059e+37
    %v450 = vand.u32 %v437, 2147483648
    %v451 = vor.u32 1.1754944e-38, %v450
    %v452 = vsel %vm449, %v451, %v447
    %v453 = vmul.f32 1.0, %v452
    %v454 = vrcp.pop %v438
    %v455 = vmul.f32 %v438, %v454
    %v456 = vsub.f32 1.0, %v455
    %v457 = vmul.f32 %v454, %v456
    %v458 = vadd.f32 %v454, %v457
    %vm459 = vweird.f32 %v438
    %vm460 = vweird.f32 %v454
    %vm461 = vmor %vm459, %vm460
    %v462 = vsel %vm461, %v454, %v458
    %v463 = vand.u32 2147483647, %v438
    %vm464 = vcmp.eq.f32.partialorder %v463, 8.507059e+37
    %v465 = vand.u32 %v438, 2147483648
    %v466 = vor.u32 1.1754944e-38, %v465
    %v467 = vsel %vm464, %v466, %v462
    %v468 = vmul.f32 1.0, %v467
    %v469 = vld [vmem:[%s4] sm:$0xff]
    %v470 = vld [vmem:[%s4 + $0x8] sm:$0xff]
    %v471 = vld [vmem:[%s4 + $0x10] sm:$0xff]
    %v472 = vld [vmem:[%s4 + $0x18] sm:$0xff]
    %v473 = vperm.slane %v31, 3
    %v475 = vsel %vm38, %v420, 0
    %v478 = vsel %vm38, %v421, 0
    %480 = vmatpush.msra.mxu0 0.0
    %481 = vmatpush.msra.mxu0 0.0
    %482 = vmatpush.msra.mxu0 0.0
    %483 = vmatpush.msra.mxu0 0.0
    %484 = vmatpush.msra.mxu0 0.0
    %485 = vmatpush.msra.mxu0 0.0
    %486 = vmatpush.msra.mxu0 0.0
    %487 = vmatpush.msra.mxu0 0.0
    %488 = vmatpush.msra.mxu0 0.0
    %489 = vmatpush.msra.mxu0 0.0
    %490 = vmatpush.msra.mxu0 0.0
    %491 = vmatpush.msra.mxu0 0.0
    %492 = vmatpush.msra.mxu0 %v472
    %493 = vmatpush.msra.mxu0 %v471
    %494 = vmatpush.msra.mxu0 %v470
    %495 = vmatpush.msra.mxu0 %v469
    %496 = vmatmul.f32.gmra.mxu0 %v475
    %v497 = vpop.f32.mrf.mxu0
    %v498 = vadd.f32 %v473, %v497
    %499 = vmatmul.f32.gmra.mxu0 %v478
    %v500 = vpop.f32.mrf.mxu0
    %v501 = vadd.f32 %v473, %v500
    %502 = vdwg.mxu0
    %v503 = vmul.f32 %v498, %v453
    %v504 = vmul.f32 %v501, %v468
    %v505 = vmax.f32 %v503, 0.0
    %v506 = vmax.f32 %v504, 0.0
    %v507 = vld [vmem:[%s5] sm:$0xff]
    %v508 = vld [vmem:[%s5 + $0x8] sm:$0xff]
    %v509 = vld [vmem:[%s5 + $0x10] sm:$0xff]
    %v510 = vld [vmem:[%s5 + $0x18] sm:$0xff]
    %v511 = vld [vmem:[%s5 + $0x20] sm:$0xff]
    %v512 = vld [vmem:[%s5 + $0x28] sm:$0xff]
    %v513 = vld [vmem:[%s5 + $0x30] sm:$0xff]
    %v514 = vld [vmem:[%s5 + $0x38] sm:$0xff]
    %v515 = vperm.slane %v31, 4
    %vm516 = vcmask 523264
    %v518 = vsel %vm516, %v505, 0
    %v521 = vsel %vm516, %v506, 0
    %523 = vmatpush.msra.mxu0 0.0
    %524 = vmatpush.msra.mxu0 0.0
    %525 = vmatpush.msra.mxu0 0.0
    %526 = vmatpush.msra.mxu0 0.0
    %527 = vmatpush.msra.mxu0 0.0
    %528 = vmatpush.msra.mxu0 0.0
    %529 = vmatpush.msra.mxu0 0.0
    %530 = vmatpush.msra.mxu0 0.0
    %531 = vmatpush.msra.mxu0 %v514
    %532 = vmatpush.msra.mxu0 %v513
    %533 = vmatpush.msra.mxu0 %v512
    %534 = vmatpush.msra.mxu0 %v511
    %535 = vmatpush.msra.mxu0 %v510
    %536 = vmatpush.msra.mxu0 %v509
    %537 = vmatpush.msra.mxu0 %v508
    %538 = vmatpush.msra.mxu0 %v507
    %539 = vmatmul.f32.gmra.mxu0 %v518
    %v540 = vpop.f32.mrf.mxu0
    %v541 = vadd.f32 %v515, %v540
    %542 = vmatmul.f32.gmra.mxu0 %v521
    %v543 = vpop.f32.mrf.mxu0
    %v544 = vadd.f32 %v515, %v543
    %545 = vdwg.mxu0
    %v546 = vadd.f32 %v420, %v541
    %v547 = vadd.f32 %v421, %v544
    %v548 = vsel %vm38, %v546, 0.0
    %549 = vadd.xlane.f32.xlu0 %v548
    %v550 = vpop.xlane.xlu0 %549
    %v551 = vsel %vm38, %v547, 0.0
    %552 = vadd.xlane.f32.xlu0 %v551
    %v553 = vpop.xlane.xlu0 %552
    %v554 = vmul.f32 %v550, %v377
    %v555 = vmul.f32 %v553, %v377
    %v556 = vsub.f32 %v546, %v554
    %v557 = vsub.f32 %v547, %v555
    %v558 = vmul.f32 %v556, %v556
    %v559 = vmul.f32 %v557, %v557
    %v560 = vsel %vm38, %v558, 0.0
    %561 = vadd.xlane.f32.xlu0 %v560
    %v562 = vpop.xlane.xlu0 %561
    %v563 = vsel %vm38, %v559, 0.0
    %564 = vadd.xlane.f32.xlu0 %v563
    %v565 = vpop.xlane.xlu0 %564
    %v566 = vmul.f32 %v562, %v377
    %v567 = vmul.f32 %v565, %v377
    %v568 = vadd.f32 %v566, 1e-05
    %v569 = vadd.f32 %v567, 1e-05
    %v570 = vrsqrt.pop %v568
    %v571 = vmul.f32 %v570, %v568
    %v572 = vmul.f32 %v571, %v570
    %v573 = vmul.f32 0.5, %v572
    %v574 = vsub.f32 1.5, %v573
    %v575 = vmul.f32 %v570, %v574
    %vm576 = vweird.f32 %v568
    %vm577 = vweird.f32 %v570
    %vm578 = vmor %vm576, %vm577
    %v579 = vsel %vm578, %v570, %v575
    %v580 = vrsqrt.pop %v569
    %v581 = vmul.f32 %v580, %v569
    %v582 = vmul.f32 %v581, %v580
    %v583 = vmul.f32 0.5, %v582
    %v584 = vsub.f32 1.5, %v583
    %v585 = vmul.f32 %v580, %v584
    %vm586 = vweird.f32 %v569
    %vm587 = vweird.f32 %v580
    %vm588 = vmor %vm586, %vm587
    %v589 = vsel %vm588, %v580, %v585
    %v590 = vmul.f32 %v556, %v579
    %v591 = vmul.f32 %v557, %v589
    %v592 = vperm.slane %v31, 7
    %v593 = vmul.f32 %v590, %v592
    %v594 = vmul.f32 %v591, %v592
    %v595 = vperm.slane %v32, 0
    %v596 = vadd.f32 %v593, %v595
    %v597 = vadd.f32 %v594, %v595
    %s598 = scalar_lea.vmem %s6, 16
    %v599 = vld [vmem:[%s598] sm:$0xff]
    %v600 = vld [vmem:[%s598 + $0x8] sm:$0x1]
    %s601 = scalar_lea.vmem %s2, 32
    %v602 = vld [vmem:[%s601] sm:$0xff]
    %v603 = vld [vmem:[%s601 + $0x8] sm:$0xff]
    %v604 = vld [vmem:[%s601 + $0x10] sm:$0xff]
    %v605 = vld [vmem:[%s601 + $0x18] sm:$0xff]
    %v606 = vperm.slane %v599, 0
    %v608 = vsel %vm38, %v596, 0
    %v611 = vsel %vm38, %v597, 0
    %613 = vmatpush.msra.mxu0 0.0
    %614 = vmatpush.msra.mxu0 0.0
    %615 = vmatpush.msra.mxu0 0.0
    %616 = vmatpush.msra.mxu0 0.0
    %617 = vmatpush.msra.mxu0 0.0
    %618 = vmatpush.msra.mxu0 0.0
    %619 = vmatpush.msra.mxu0 0.0
    %620 = vmatpush.msra.mxu0 0.0
    %621 = vmatpush.msra.mxu0 0.0
    %622 = vmatpush.msra.mxu0 0.0
    %623 = vmatpush.msra.mxu0 0.0
    %624 = vmatpush.msra.mxu0 0.0
    %625 = vmatpush.msra.mxu0 %v605
    %626 = vmatpush.msra.mxu0 %v604
    %627 = vmatpush.msra.mxu0 %v603
    %628 = vmatpush.msra.mxu0 %v602
    %629 = vmatmul.f32.gmra.mxu0 %v608
    %v630 = vpop.f32.mrf.mxu0
    %v631 = vadd.f32 %v606, %v630
    %632 = vmatmul.f32.gmra.mxu0 %v611
    %v633 = vpop.f32.mrf.mxu0
    %v634 = vadd.f32 %v606, %v633
    %635 = vdwg.mxu0
    %638 = vrot.lane.b32.xlu0 %v631, 96
    %v639 = vpop.permute.xlu0 %638
    %640 = vrot.lane.b32.xlu0 %v634, 96
    %v641 = vpop.permute.xlu0 %640
    %v642 = vsel %vm74, %v631, 0
    %v644 = vsel %vm74, %v634, 0
    %v646 = vsel %vm74, %v639, 0
    %v648 = vsel %vm74, %v641, 0
    %650 = vmatpush.xpose.msra.mxu0 0.0
    %651 = vmatpush.xpose.msra.mxu0 0.0
    %652 = vmatpush.xpose.msra.mxu0 0.0
    %653 = vmatpush.xpose.msra.mxu0 0.0
    %654 = vmatpush.xpose.msra.mxu0 0.0
    %655 = vmatpush.xpose.msra.mxu0 0.0
    %656 = vmatpush.xpose.msra.mxu0 0.0
    %657 = vmatpush.xpose.msra.mxu0 0.0
    %658 = vmatpush.xpose.msra.mxu0 0.0
    %659 = vmatpush.xpose.msra.mxu0 0.0
    %660 = vmatpush.xpose.msra.mxu0 0.0
    %661 = vmatpush.xpose.msra.mxu0 0.0
    %662 = vmatpush.xpose.msra.mxu0 0.0
    %663 = vmatpush.xpose.msra.mxu0 0.0
    %664 = vmatpush.xpose.msra.mxu0 %v648
    %665 = vmatpush.xpose.msra.mxu0 %v646
    %666 = vmatmul.f32.gmra.mxu0 %v642
    %v667 = vpop.f32.mrf.mxu0
    %v668 = vadd.f32 0.0, %v667
    %669 = vmatmul.f32.gmra.mxu0 %v644
    %v670 = vpop.f32.mrf.mxu0
    %v671 = vadd.f32 0.0, %v670
    %672 = vdwg.mxu0
    %v673 = vmul.f32 %v668, 0.25
    %v674 = vmul.f32 %v671, 0.25
    %v675 = vadd.f32 %v673, %v29
    %v676 = vadd.f32 %v674, %v30
    %v677 = vsel %vm74, %v675, -inf
    %678 = vmax.xlane.f32.xlu0 %v677
    %v679 = vpop.xlane.xlu0 %678
    %v680 = vsel %vm74, %v676, -inf
    %681 = vmax.xlane.f32.xlu0 %v680
    %v682 = vpop.xlane.xlu0 %681
    %v683 = vsub.f32 %v675, %v679
    %v684 = vsub.f32 %v676, %v682
    %v685 = vmul.f32 %v683, 1.442695
    %v686 = vpow.pop %v685
    %v687 = vmul.f32 %v684, 1.442695
    %v688 = vpow.pop %v687
    %v689 = vsel %vm74, %v686, 0.0
    %690 = vadd.xlane.f32.xlu0 %v689
    %v691 = vpop.xlane.xlu0 %690
    %v692 = vsel %vm74, %v688, 0.0
    %693 = vadd.xlane.f32.xlu0 %v692
    %v694 = vpop.xlane.xlu0 %693
    %v695 = vrcp.pop %v691
    %v696 = vmul.f32 %v691, %v695
    %v697 = vsub.f32 1.0, %v696
    %v698 = vmul.f32 %v695, %v697
    %v699 = vadd.f32 %v695, %v698
    %vm700 = vweird.f32 %v691
    %vm701 = vweird.f32 %v695
    %vm702 = vmor %vm700, %vm701
    %v703 = vsel %vm702, %v695, %v699
    %v704 = vand.u32 2147483647, %v691
    %vm705 = vcmp.eq.f32.partialorder %v704, 8.507059e+37
    %v706 = vand.u32 %v691, 2147483648
    %v707 = vor.u32 1.1754944e-38, %v706
    %v708 = vsel %vm705, %v707, %v703
    %v709 = vmul.f32 %v686, %v708
    %v710 = vrcp.pop %v694
    %v711 = vmul.f32 %v694, %v710
    %v712 = vsub.f32 1.0, %v711
    %v713 = vmul.f32 %v710, %v712
    %v714 = vadd.f32 %v710, %v713
    %vm715 = vweird.f32 %v694
    %vm716 = vweird.f32 %v710
    %vm717 = vmor %vm715, %vm716
    %v718 = vsel %vm717, %v710, %v714
    %v719 = vand.u32 2147483647, %v694
    %vm720 = vcmp.eq.f32.partialorder %v719, 8.507059e+37
    %v721 = vand.u32 %v694, 2147483648
    %v722 = vor.u32 1.1754944e-38, %v721
    %v723 = vsel %vm720, %v722, %v718
    %v724 = vmul.f32 %v688, %v723
    %725 = vrot.lane.b32.xlu0 %v631, 64
    %v726 = vpop.permute.xlu0 %725
    %727 = vrot.lane.b32.xlu0 %v634, 64
    %v728 = vpop.permute.xlu0 %727
    %v732 = vsel %vm74, %v709, 0
    %v735 = vsel %vm74, %v724, 0
    %737 = vmatpush.msra.mxu0 0.0
    %738 = vmatpush.msra.mxu0 0.0
    %739 = vmatpush.msra.mxu0 0.0
    %740 = vmatpush.msra.mxu0 0.0
    %741 = vmatpush.msra.mxu0 0.0
    %742 = vmatpush.msra.mxu0 0.0
    %743 = vmatpush.msra.mxu0 0.0
    %744 = vmatpush.msra.mxu0 0.0
    %745 = vmatpush.msra.mxu0 0.0
    %746 = vmatpush.msra.mxu0 0.0
    %747 = vmatpush.msra.mxu0 0.0
    %748 = vmatpush.msra.mxu0 0.0
    %749 = vmatpush.msra.mxu0 0.0
    %750 = vmatpush.msra.mxu0 0.0
    %751 = vmatpush.msra.mxu0 %v728
    %752 = vmatpush.msra.mxu0 %v726
    %753 = vmatmul.f32.gmra.mxu0 %v732
    %v754 = vpop.f32.mrf.mxu0
    %v755 = vadd.f32 0.0, %v754
    %756 = vmatmul.f32.gmra.mxu0 %v735
    %v757 = vpop.f32.mrf.mxu0
    %v758 = vadd.f32 0.0, %v757
    %759 = vdwg.mxu0
    %760 = vrot.lane.b32.xlu0 %v631, 112
    %v761 = vpop.permute.xlu0 %760
    %762 = vrot.lane.b32.xlu0 %v634, 112
    %v763 = vpop.permute.xlu0 %762
    %764 = vrot.lane.b32.xlu0 %v631, 80
    %v765 = vpop.permute.xlu0 %764
    %766 = vrot.lane.b32.xlu0 %v634, 80
    %v767 = vpop.permute.xlu0 %766
    %v768 = vsel %vm74, %v761, 0
    %v770 = vsel %vm74, %v763, 0
    %v772 = vsel %vm74, %v765, 0
    %v774 = vsel %vm74, %v767, 0
    %776 = vmatpush.xpose.msra.mxu0 0.0
    %777 = vmatpush.xpose.msra.mxu0 0.0
    %778 = vmatpush.xpose.msra.mxu0 0.0
    %779 = vmatpush.xpose.msra.mxu0 0.0
    %780 = vmatpush.xpose.msra.mxu0 0.0
    %781 = vmatpush.xpose.msra.mxu0 0.0
    %782 = vmatpush.xpose.msra.mxu0 0.0
    %783 = vmatpush.xpose.msra.mxu0 0.0
    %784 = vmatpush.xpose.msra.mxu0 0.0
    %785 = vmatpush.xpose.msra.mxu0 0.0
    %786 = vmatpush.xpose.msra.mxu0 0.0
    %787 = vmatpush.xpose.msra.mxu0 0.0
    %788 = vmatpush.xpose.msra.mxu0 0.0
    %789 = vmatpush.xpose.msra.mxu0 0.0
    %790 = vmatpush.xpose.msra.mxu0 %v774
    %791 = vmatpush.xpose.msra.mxu0 %v772
    %792 = vmatmul.f32.gmra.mxu0 %v768
    %v793 = vpop.f32.mrf.mxu0
    %v794 = vadd.f32 0.0, %v793
    %795 = vmatmul.f32.gmra.mxu0 %v770
    %v796 = vpop.f32.mrf.mxu0
    %v797 = vadd.f32 0.0, %v796
    %798 = vdwg.mxu0
    %v799 = vmul.f32 %v794, 0.25
    %v800 = vmul.f32 %v797, 0.25
    %v801 = vadd.f32 %v799, %v29
    %v802 = vadd.f32 %v800, %v30
    %v803 = vsel %vm74, %v801, -inf
    %804 = vmax.xlane.f32.xlu0 %v803
    %v805 = vpop.xlane.xlu0 %804
    %v806 = vsel %vm74, %v802, -inf
    %807 = vmax.xlane.f32.xlu0 %v806
    %v808 = vpop.xlane.xlu0 %807
    %v809 = vsub.f32 %v801, %v805
    %v810 = vsub.f32 %v802, %v808
    %v811 = vmul.f32 %v809, 1.442695
    %v812 = vpow.pop %v811
    %v813 = vmul.f32 %v810, 1.442695
    %v814 = vpow.pop %v813
    %v815 = vsel %vm74, %v812, 0.0
    %816 = vadd.xlane.f32.xlu0 %v815
    %v817 = vpop.xlane.xlu0 %816
    %v818 = vsel %vm74, %v814, 0.0
    %819 = vadd.xlane.f32.xlu0 %v818
    %v820 = vpop.xlane.xlu0 %819
    %v821 = vrcp.pop %v817
    %v822 = vmul.f32 %v817, %v821
    %v823 = vsub.f32 1.0, %v822
    %v824 = vmul.f32 %v821, %v823
    %v825 = vadd.f32 %v821, %v824
    %vm826 = vweird.f32 %v817
    %vm827 = vweird.f32 %v821
    %vm828 = vmor %vm826, %vm827
    %v829 = vsel %vm828, %v821, %v825
    %v830 = vand.u32 2147483647, %v817
    %vm831 = vcmp.eq.f32.partialorder %v830, 8.507059e+37
    %v832 = vand.u32 %v817, 2147483648
    %v833 = vor.u32 1.1754944e-38, %v832
    %v834 = vsel %vm831, %v833, %v829
    %v835 = vmul.f32 %v812, %v834
    %v836 = vrcp.pop %v820
    %v837 = vmul.f32 %v820, %v836
    %v838 = vsub.f32 1.0, %v837
    %v839 = vmul.f32 %v836, %v838
    %v840 = vadd.f32 %v836, %v839
    %vm841 = vweird.f32 %v820
    %vm842 = vweird.f32 %v836
    %vm843 = vmor %vm841, %vm842
    %v844 = vsel %vm843, %v836, %v840
    %v845 = vand.u32 2147483647, %v820
    %vm846 = vcmp.eq.f32.partialorder %v845, 8.507059e+37
    %v847 = vand.u32 %v820, 2147483648
    %v848 = vor.u32 1.1754944e-38, %v847
    %v849 = vsel %vm846, %v848, %v844
    %v850 = vmul.f32 %v814, %v849
    %851 = vrot.lane.b32.xlu0 %v631, 48
    %v852 = vpop.permute.xlu0 %851
    %853 = vrot.lane.b32.xlu0 %v634, 48
    %v854 = vpop.permute.xlu0 %853
    %v858 = vsel %vm74, %v835, 0
    %v861 = vsel %vm74, %v850, 0
    %863 = vmatpush.msra.mxu0 0.0
    %864 = vmatpush.msra.mxu0 0.0
    %865 = vmatpush.msra.mxu0 0.0
    %866 = vmatpush.msra.mxu0 0.0
    %867 = vmatpush.msra.mxu0 0.0
    %868 = vmatpush.msra.mxu0 0.0
    %869 = vmatpush.msra.mxu0 0.0
    %870 = vmatpush.msra.mxu0 0.0
    %871 = vmatpush.msra.mxu0 0.0
    %872 = vmatpush.msra.mxu0 0.0
    %873 = vmatpush.msra.mxu0 0.0
    %874 = vmatpush.msra.mxu0 0.0
    %875 = vmatpush.msra.mxu0 0.0
    %876 = vmatpush.msra.mxu0 0.0
    %877 = vmatpush.msra.mxu0 %v854
    %878 = vmatpush.msra.mxu0 %v852
    %879 = vmatmul.f32.gmra.mxu0 %v858
    %v880 = vpop.f32.mrf.mxu0
    %v881 = vadd.f32 0.0, %v880
    %882 = vmatmul.f32.gmra.mxu0 %v861
    %v883 = vpop.f32.mrf.mxu0
    %v884 = vadd.f32 0.0, %v883
    %885 = vdwg.mxu0
    %888 = vrot.lane.b32.xlu0 %v881, 16
    %v889 = vpop.permute.xlu0 %888
    %890 = vrot.lane.b32.xlu0 %v884, 16
    %v891 = vpop.permute.xlu0 %890
    %v894 = vsel %vm74, %v755, %v889
    %v895 = vsel %vm74, %v758, %v891
    %s896 = scalar_lea.vmem %s3, 32
    %v897 = vld [vmem:[%s896] sm:$0xff]
    %v898 = vld [vmem:[%s896 + $0x8] sm:$0xff]
    %v899 = vld [vmem:[%s896 + $0x10] sm:$0xff]
    %v900 = vld [vmem:[%s896 + $0x18] sm:$0xff]
    %v901 = vperm.slane %v599, 1
    %v903 = vsel %vm38, %v894, 0
    %v906 = vsel %vm38, %v895, 0
    %908 = vmatpush.msra.mxu0 0.0
    %909 = vmatpush.msra.mxu0 0.0
    %910 = vmatpush.msra.mxu0 0.0
    %911 = vmatpush.msra.mxu0 0.0
    %912 = vmatpush.msra.mxu0 0.0
    %913 = vmatpush.msra.mxu0 0.0
    %914 = vmatpush.msra.mxu0 0.0
    %915 = vmatpush.msra.mxu0 0.0
    %916 = vmatpush.msra.mxu0 0.0
    %917 = vmatpush.msra.mxu0 0.0
    %918 = vmatpush.msra.mxu0 0.0
    %919 = vmatpush.msra.mxu0 0.0
    %920 = vmatpush.msra.mxu0 %v900
    %921 = vmatpush.msra.mxu0 %v899
    %922 = vmatpush.msra.mxu0 %v898
    %923 = vmatpush.msra.mxu0 %v897
    %924 = vmatmul.f32.gmra.mxu0 %v903
    %v925 = vpop.f32.mrf.mxu0
    %v926 = vadd.f32 %v901, %v925
    %927 = vmatmul.f32.gmra.mxu0 %v906
    %v928 = vpop.f32.mrf.mxu0
    %v929 = vadd.f32 %v901, %v928
    %930 = vdwg.mxu0
    %v931 = vadd.f32 %v596, %v926
    %v932 = vadd.f32 %v597, %v929
    %v933 = vsel %vm38, %v931, 0.0
    %934 = vadd.xlane.f32.xlu0 %v933
    %v935 = vpop.xlane.xlu0 %934
    %v936 = vsel %vm38, %v932, 0.0
    %937 = vadd.xlane.f32.xlu0 %v936
    %v938 = vpop.xlane.xlu0 %937
    %v939 = vmul.f32 %v935, %v377
    %v940 = vmul.f32 %v938, %v377
    %v941 = vsub.f32 %v931, %v939
    %v942 = vsub.f32 %v932, %v940
    %v943 = vmul.f32 %v941, %v941
    %v944 = vmul.f32 %v942, %v942
    %v945 = vsel %vm38, %v943, 0.0
    %946 = vadd.xlane.f32.xlu0 %v945
    %v947 = vpop.xlane.xlu0 %946
    %v948 = vsel %vm38, %v944, 0.0
    %949 = vadd.xlane.f32.xlu0 %v948
    %v950 = vpop.xlane.xlu0 %949
    %v951 = vmul.f32 %v947, %v377
    %v952 = vmul.f32 %v950, %v377
    %v953 = vadd.f32 %v951, 1e-05
    %v954 = vadd.f32 %v952, 1e-05
    %v955 = vrsqrt.pop %v953
    %v956 = vmul.f32 %v955, %v953
    %v957 = vmul.f32 %v956, %v955
    %v958 = vmul.f32 0.5, %v957
    %v959 = vsub.f32 1.5, %v958
    %v960 = vmul.f32 %v955, %v959
    %vm961 = vweird.f32 %v953
    %vm962 = vweird.f32 %v955
    %vm963 = vmor %vm961, %vm962
    %v964 = vsel %vm963, %v955, %v960
    %v965 = vrsqrt.pop %v954
    %v966 = vmul.f32 %v965, %v954
    %v967 = vmul.f32 %v966, %v965
    %v968 = vmul.f32 0.5, %v967
    %v969 = vsub.f32 1.5, %v968
    %v970 = vmul.f32 %v965, %v969
    %vm971 = vweird.f32 %v954
    %vm972 = vweird.f32 %v965
    %vm973 = vmor %vm971, %vm972
    %v974 = vsel %vm973, %v965, %v970
    %v975 = vmul.f32 %v941, %v964
    %v976 = vmul.f32 %v942, %v974
    %v977 = vperm.slane %v599, 5
    %v978 = vmul.f32 %v975, %v977
    %v979 = vmul.f32 %v976, %v977
    %v980 = vperm.slane %v599, 6
    %v981 = vadd.f32 %v978, %v980
    %v982 = vadd.f32 %v979, %v980
    %v983 = vperm.slane %v599, 2
    %v984 = vmul.f32 %v981, %v983
    %v985 = vmul.f32 %v982, %v983
    %v986 = vsel %vm38, %v984, 0.0
    %987 = vadd.xlane.f32.xlu0 %v986
    %v988 = vpop.xlane.xlu0 %987
    %v989 = vsel %vm38, %v985, 0.0
    %990 = vadd.xlane.f32.xlu0 %v989
    %v991 = vpop.xlane.xlu0 %990
    %v992 = vxor.u32 %v988, 2147483648
    %v993 = vxor.u32 %v991, 2147483648
    %v994 = vmul.f32 %v992, 1.442695
    %v995 = vpow.pop %v994
    %v996 = vmul.f32 %v993, 1.442695
    %v997 = vpow.pop %v996
    %v998 = vadd.f32 %v995, 1.0
    %v999 = vadd.f32 %v997, 1.0
    %v1000 = vrcp.pop %v998
    %v1001 = vmul.f32 %v998, %v1000
    %v1002 = vsub.f32 1.0, %v1001
    %v1003 = vmul.f32 %v1000, %v1002
    %v1004 = vadd.f32 %v1000, %v1003
    %vm1005 = vweird.f32 %v998
    %vm1006 = vweird.f32 %v1000
    %vm1007 = vmor %vm1005, %vm1006
    %v1008 = vsel %vm1007, %v1000, %v1004
    %v1009 = vand.u32 2147483647, %v998
    %vm1010 = vcmp.eq.f32.partialorder %v1009, 8.507059e+37
    %v1011 = vand.u32 %v998, 2147483648
    %v1012 = vor.u32 1.1754944e-38, %v1011
    %v1013 = vsel %vm1010, %v1012, %v1008
    %v1014 = vmul.f32 1.0, %v1013
    %v1015 = vrcp.pop %v999
    %v1016 = vmul.f32 %v999, %v1015
    %v1017 = vsub.f32 1.0, %v1016
    %v1018 = vmul.f32 %v1015, %v1017
    %v1019 = vadd.f32 %v1015, %v1018
    %vm1020 = vweird.f32 %v999
    %vm1021 = vweird.f32 %v1015
    %vm1022 = vmor %vm1020, %vm1021
    %v1023 = vsel %vm1022, %v1015, %v1019
    %v1024 = vand.u32 2147483647, %v999
    %vm1025 = vcmp.eq.f32.partialorder %v1024, 8.507059e+37
    %v1026 = vand.u32 %v999, 2147483648
    %v1027 = vor.u32 1.1754944e-38, %v1026
    %v1028 = vsel %vm1025, %v1027, %v1023
    %v1029 = vmul.f32 1.0, %v1028
    %s1030 = scalar_lea.vmem %s4, 32
    %v1031 = vld [vmem:[%s1030] sm:$0xff]
    %v1032 = vld [vmem:[%s1030 + $0x8] sm:$0xff]
    %v1033 = vld [vmem:[%s1030 + $0x10] sm:$0xff]
    %v1034 = vld [vmem:[%s1030 + $0x18] sm:$0xff]
    %v1035 = vperm.slane %v599, 3
    %v1037 = vsel %vm38, %v981, 0
    %v1040 = vsel %vm38, %v982, 0
    %1042 = vmatpush.msra.mxu0 0.0
    %1043 = vmatpush.msra.mxu0 0.0
    %1044 = vmatpush.msra.mxu0 0.0
    %1045 = vmatpush.msra.mxu0 0.0
    %1046 = vmatpush.msra.mxu0 0.0
    %1047 = vmatpush.msra.mxu0 0.0
    %1048 = vmatpush.msra.mxu0 0.0
    %1049 = vmatpush.msra.mxu0 0.0
    %1050 = vmatpush.msra.mxu0 0.0
    %1051 = vmatpush.msra.mxu0 0.0
    %1052 = vmatpush.msra.mxu0 0.0
    %1053 = vmatpush.msra.mxu0 0.0
    %1054 = vmatpush.msra.mxu0 %v1034
    %1055 = vmatpush.msra.mxu0 %v1033
    %1056 = vmatpush.msra.mxu0 %v1032
    %1057 = vmatpush.msra.mxu0 %v1031
    %1058 = vmatmul.f32.gmra.mxu0 %v1037
    %v1059 = vpop.f32.mrf.mxu0
    %v1060 = vadd.f32 %v1035, %v1059
    %1061 = vmatmul.f32.gmra.mxu0 %v1040
    %v1062 = vpop.f32.mrf.mxu0
    %v1063 = vadd.f32 %v1035, %v1062
    %1064 = vdwg.mxu0
    %v1065 = vmul.f32 %v1060, %v1014
    %v1066 = vmul.f32 %v1063, %v1029
    %v1067 = vmax.f32 %v1065, 0.0
    %v1068 = vmax.f32 %v1066, 0.0
    %s1069 = scalar_lea.vmem %s5, 64
    %v1070 = vld [vmem:[%s1069] sm:$0xff]
    %v1071 = vld [vmem:[%s1069 + $0x8] sm:$0xff]
    %v1072 = vld [vmem:[%s1069 + $0x10] sm:$0xff]
    %v1073 = vld [vmem:[%s1069 + $0x18] sm:$0xff]
    %v1074 = vld [vmem:[%s1069 + $0x20] sm:$0xff]
    %v1075 = vld [vmem:[%s1069 + $0x28] sm:$0xff]
    %v1076 = vld [vmem:[%s1069 + $0x30] sm:$0xff]
    %v1077 = vld [vmem:[%s1069 + $0x38] sm:$0xff]
    %v1078 = vperm.slane %v599, 4
    %v1080 = vsel %vm516, %v1067, 0
    %v1083 = vsel %vm516, %v1068, 0
    %1085 = vmatpush.msra.mxu0 0.0
    %1086 = vmatpush.msra.mxu0 0.0
    %1087 = vmatpush.msra.mxu0 0.0
    %1088 = vmatpush.msra.mxu0 0.0
    %1089 = vmatpush.msra.mxu0 0.0
    %1090 = vmatpush.msra.mxu0 0.0
    %1091 = vmatpush.msra.mxu0 0.0
    %1092 = vmatpush.msra.mxu0 0.0
    %1093 = vmatpush.msra.mxu0 %v1077
    %1094 = vmatpush.msra.mxu0 %v1076
    %1095 = vmatpush.msra.mxu0 %v1075
    %1096 = vmatpush.msra.mxu0 %v1074
    %1097 = vmatpush.msra.mxu0 %v1073
    %1098 = vmatpush.msra.mxu0 %v1072
    %1099 = vmatpush.msra.mxu0 %v1071
    %1100 = vmatpush.msra.mxu0 %v1070
    %1101 = vmatmul.f32.gmra.mxu0 %v1080
    %v1102 = vpop.f32.mrf.mxu0
    %v1103 = vadd.f32 %v1078, %v1102
    %1104 = vmatmul.f32.gmra.mxu0 %v1083
    %v1105 = vpop.f32.mrf.mxu0
    %v1106 = vadd.f32 %v1078, %v1105
    %1107 = vdwg.mxu0
    %v1108 = vadd.f32 %v981, %v1103
    %v1109 = vadd.f32 %v982, %v1106
    %v1110 = vsel %vm38, %v1108, 0.0
    %1111 = vadd.xlane.f32.xlu0 %v1110
    %v1112 = vpop.xlane.xlu0 %1111
    %v1113 = vsel %vm38, %v1109, 0.0
    %1114 = vadd.xlane.f32.xlu0 %v1113
    %v1115 = vpop.xlane.xlu0 %1114
    %v1116 = vmul.f32 %v1112, %v377
    %v1117 = vmul.f32 %v1115, %v377
    %v1118 = vsub.f32 %v1108, %v1116
    %v1119 = vsub.f32 %v1109, %v1117
    %v1120 = vmul.f32 %v1118, %v1118
    %v1121 = vmul.f32 %v1119, %v1119
    %v1122 = vsel %vm38, %v1120, 0.0
    %1123 = vadd.xlane.f32.xlu0 %v1122
    %v1124 = vpop.xlane.xlu0 %1123
    %v1125 = vsel %vm38, %v1121, 0.0
    %1126 = vadd.xlane.f32.xlu0 %v1125
    %v1127 = vpop.xlane.xlu0 %1126
    %v1128 = vmul.f32 %v1124, %v377
    %v1129 = vmul.f32 %v1127, %v377
    %v1130 = vadd.f32 %v1128, 1e-05
    %v1131 = vadd.f32 %v1129, 1e-05
    %v1132 = vrsqrt.pop %v1130
    %v1133 = vmul.f32 %v1132, %v1130
    %v1134 = vmul.f32 %v1133, %v1132
    %v1135 = vmul.f32 0.5, %v1134
    %v1136 = vsub.f32 1.5, %v1135
    %v1137 = vmul.f32 %v1132, %v1136
    %vm1138 = vweird.f32 %v1130
    %vm1139 = vweird.f32 %v1132
    %vm1140 = vmor %vm1138, %vm1139
    %v1141 = vsel %vm1140, %v1132, %v1137
    %v1142 = vrsqrt.pop %v1131
    %v1143 = vmul.f32 %v1142, %v1131
    %v1144 = vmul.f32 %v1143, %v1142
    %v1145 = vmul.f32 0.5, %v1144
    %v1146 = vsub.f32 1.5, %v1145
    %v1147 = vmul.f32 %v1142, %v1146
    %vm1148 = vweird.f32 %v1131
    %vm1149 = vweird.f32 %v1142
    %vm1150 = vmor %vm1148, %vm1149
    %v1151 = vsel %vm1150, %v1142, %v1147
    %v1152 = vmul.f32 %v1118, %v1141
    %v1153 = vmul.f32 %v1119, %v1151
    %v1154 = vperm.slane %v599, 7
    %v1155 = vmul.f32 %v1152, %v1154
    %v1156 = vmul.f32 %v1153, %v1154
    %v1157 = vperm.slane %v600, 0
    %v1158 = vadd.f32 %v1155, %v1157
    %v1159 = vadd.f32 %v1156, %v1157
    %1160 = vst.msk [vmem:[#allocation2] sm:$0xff] %vm38, %v1158
    %1161 = vst.msk [vmem:[#allocation2 + $0x8] sm:$0xff] %vm38, %v1159
    // Predicated region
    $region30: #{tpu_custom_call.1} parent=1 // pred_check
      _
    $region31: #{tpu_custom_call.1} parent=1 // pred_check_branch
      %1163 = sbr.rel (0) target = $region33
    $region32: #{tpu_custom_call.1} parent=1 // pred_region
      %1165 = vsyncadd [#allocation3], 0
      %s1166 = sshll.u32 [#allocation2], 4
      %s1167 = int_to_ptr.vmem [resolvable:$true] %s1166
      %s1168 = sshll.u32 %s7, 4
      %s1169 = int_to_ptr.hbm [resolvable:$true] %s1168
      %1174 = dma.vmem_to_hbm [thread:$0]  %s1167, 256, %s1169, [#allocation3], 128, 128, 8
    $region33: #{tpu_custom_call.1} parent=1 // pred_fallthru
      _
    // Predicated region
    $region34: #{tpu_custom_call.1} parent=1 // pred_check
      _
    $region35: #{tpu_custom_call.1} parent=1 // pred_check_branch
      %1176 = sbr.rel (0) target = $region37
    $region36: #{tpu_custom_call.1} parent=1 // pred_region
      %1178 = dma.done [#allocation3], 256
    $region37: #{tpu_custom_call.1} parent=1 // pred_fallthru
      _
    %1179 = vsyncpa [#allocation3], 1

</llo_original>
